<compile_context>
chip_gen: v7x
topology: tpu7x:2x2x1
jax: 0.10.0
libtpu: 0.0.40
codegen_flags: <defaults>
</compile_context>

<pallas_src>
import functools
import math

import jax
import jax.numpy as jnp
from jax.experimental import pallas as pl
from jax.experimental.pallas import tpu as pltpu

# ---------------- model config (small, consistent with the module) ----------
N_HEADS = 4
HIDDEN = 32
HEAD_DIM = HIDDEN // N_HEADS
LN_EPS = 1e-12
BATCH = 2
SEQ = 8

# cross-batch fill for the flattened-token attention mask; large enough that
# exp(cross - rowmax) underflows to exactly 0 even if a row is heavily masked.
CROSS_BATCH_NEG = -1e30


# ------------------------------- kernel --------------------------------------
def _mha_kernel(x_ref, mask_ref, w_ref, vec_ref, out_ref, *, n_heads, head_dim, eps):
    """Whole batch in one invocation; everything VMEM-resident.

    x_ref    : (N, H)       flattened activations, N = B*S
    mask_ref : (N, N)       block-diagonal additive attention mask (built by wrapper)
    w_ref    : (H, 4H)      [ Wqkv (head-major cols) | Wdense^T ]  -> (32, 128)
    vec_ref  : (2, 4H)      row0 = [b_qkv | b_dense], row1 = [gamma | beta | pad]
    out_ref  : (N, H)
    """
    nh, dh = n_heads, head_dim
    H = nh * dh

    x = x_ref[...].astype(jnp.float32)            # (N, H)
    mask = mask_ref[...].astype(jnp.float32)      # (N, N)
    w = w_ref[...]                                # (H, 4H)
    vec = vec_ref[...]                            # (2, 4H)

    w_qkv = w[:, :3 * H]                          # (H, 3H) cols ordered (head, {q,k,v}, d)
    w_out = w[:, 3 * H:]                          # (H, H)  dense weight, (in, out)
    b_qkv = vec[0:1, :3 * H]                      # (1, 3H)
    b_out = vec[0:1, 3 * H:4 * H]                 # (1, H)
    gamma = vec[1:2, 0:H]                         # (1, H)
    beta = vec[1:2, H:2 * H]                      # (1, H)

    # --- fused Q/K/V projection over the whole flattened batch: one MXU pass ---
    qkv = jnp.dot(x, w_qkv, preferred_element_type=jnp.float32) + b_qkv   # (N, 3H)

    # --- head gather: columns are head-major, so one 3*dh-wide slice per head and
    #     a single leading-dim stack replace the old per-(batch,head) shuffle. ---
    per_head = jnp.stack(
        [qkv[:, h * 3 * dh:(h + 1) * 3 * dh] for h in range(nh)], axis=0)  # (nh, N, 3*dh)

    inv_sqrt_dh = 1.0 / math.sqrt(dh)
    q = per_head[..., 0 * dh:1 * dh] * inv_sqrt_dh   # fold 1/sqrt(dh) into q
    k = per_head[..., 1 * dh:2 * dh]                 # (nh, N, dh)
    v = per_head[..., 2 * dh:3 * dh]                 # (nh, N, dh)

    # --- attention over the flattened token axis (block-diagonal mask makes it
    #     numerically identical to per-batch attention) -------------------------
    scores = jnp.einsum('hnd,hmd->hnm', q, k,
                        preferred_element_type=jnp.float32)               # (nh, N, N)
    scores = scores + mask[None, :, :]

    scores = scores - jnp.max(scores, axis=-1, keepdims=True)
    p = jnp.exp(scores)
    denom = jnp.sum(p, axis=-1, keepdims=True)
    p = p * pl.reciprocal(denom)          # exact reciprocal -> tight 1e-5 softmax

    ctx = jnp.einsum('hnm,hmd->hnd', p, v,
                     preferred_element_type=jnp.float32)                  # (nh, N, dh)

    # --- output projection with the head un-split fused in: sum_h ctx_h @ Wd_h ---
    hidden = b_out                                                        # (1, H) -> bcast
    for h in range(nh):
        hidden = hidden + jnp.dot(ctx[h], w_out[h * dh:(h + 1) * dh, :],
                                  preferred_element_type=jnp.float32)     # (N, H)

    # --- residual + LayerNorm ---------------------------------------------------
    y = hidden + x
    mu = jnp.mean(y, axis=-1, keepdims=True)
    var = jnp.mean((y - mu) ** 2, axis=-1, keepdims=True)
    out = (y - mu) * jax.lax.rsqrt(var + eps) * gamma + beta

    out_ref[...] = out.astype(out_ref.dtype)


# ------------------------- parameter packing (done once) ---------------------
def pack_params(params, n_heads=N_HEADS):
    """Pre-pack nn.Linear weights into two lane-dense slabs (call once at load time)."""
    H = params["wq"].shape[0]
    dh = H // n_heads

    def head_major_cols(wq, wk, wv):
        # nn.Linear weight is (out, in); output feature o = h*dh + d.
        w3 = jnp.stack([wq, wk, wv], axis=0)            # (3, out, in)   [t, o, i]
        w3 = w3.reshape(3, n_heads, dh, H)              # [t, h, d, i]
        w3 = jnp.transpose(w3, (1, 0, 2, 3))            # [h, t, d, i]
        return w3.reshape(3 * H, H).T                   # (in, 3H), cols ordered (h, t, d)

    w_qkv = head_major_cols(params["wq"], params["wk"], params["wv"])
    w_all = jnp.concatenate([w_qkv, params["wd"].T], axis=1)              # (H, 4H) = (32,128)

    b3 = jnp.stack([params["bq"], params["bk"], params["bv"]], axis=0)    # (3, H)
    b_qkv = jnp.transpose(b3.reshape(3, n_heads, dh), (1, 0, 2)).reshape(3 * H)
    row0 = jnp.concatenate([b_qkv, params["bd"]])                         # (4H,)
    row1 = jnp.concatenate([params["ln_gamma"], params["ln_beta"],
                            jnp.zeros((2 * H,), jnp.float32)])            # (4H,)
    vec_all = jnp.stack([row0, row1], axis=0)                             # (2, 4H)
    return {"w_all": w_all.astype(jnp.float32), "vec_all": vec_all.astype(jnp.float32)}


# ------------------------------- wrapper --------------------------------------
@functools.partial(jax.jit, static_argnames=("n_heads", "eps"))
def multi_head_attention(x, attention_mask, packed, *, n_heads=N_HEADS, eps=LN_EPS):
    """x: (B, S, H) float32; attention_mask: (B, 1, S, S) additive mask."""
    B, S, H = x.shape
    N = B * S
    dh = H // n_heads

    x2 = x.reshape(N, H)

    # Embed the per-batch (B,1,S,S) additive mask into a flat (N, N) block-diagonal
    # mask: within-batch entries keep the user mask, cross-batch entries get -1e30
    # (exactly zero probability after softmax) -> attention over the flattened token
    # axis is numerically identical to per-batch attention.
    m = attention_mask.reshape(B, S, S).astype(jnp.float32)
    full = jnp.broadcast_to(m[:, :, None, :], (B, S, B, S))
    same_batch = jnp.eye(B, dtype=bool)[:, None, :, None]                 # (B,1,B,1)
    mask_full = jnp.where(same_batch, full, CROSS_BATCH_NEG).reshape(N, N)

    kernel = functools.partial(_mha_kernel, n_heads=n_heads, head_dim=dh, eps=eps)
    vmem = pl.BlockSpec(memory_space=pltpu.MemorySpace.VMEM)
    out = pl.pallas_call(
        kernel,
        out_shape=jax.ShapeDtypeStruct((N, H), x.dtype),
        in_specs=[vmem] * 4,
        out_specs=vmem,
    )(x2, mask_full, packed["w_all"], packed["vec_all"])
    return out.reshape(B, S, H)


# ---------------- deterministic parameter init (synthetic) ------------------
def init_params(key, hidden):
    ks = jax.random.split(key, 8)

    def xavier(k, shape):
        fan_in, fan_out = shape[1], shape[0]
        limit = math.sqrt(6.0 / (fan_in + fan_out))
        return jax.random.uniform(k, shape, jnp.float32, -limit, limit)

    return {
        "wq": xavier(ks[0], (hidden, hidden)),
        "wk": xavier(ks[1], (hidden, hidden)),
        "wv": xavier(ks[2], (hidden, hidden)),
        "wd": xavier(ks[3], (hidden, hidden)),
        "bq": 1e-6 * jax.random.normal(ks[4], (hidden,), jnp.float32),
        "bk": 1e-6 * jax.random.normal(ks[5], (hidden,), jnp.float32),
        "bv": 1e-6 * jax.random.normal(ks[6], (hidden,), jnp.float32),
        "bd": 1e-6 * jax.random.normal(ks[7], (hidden,), jnp.float32),
        "ln_gamma": jnp.ones((hidden,), jnp.float32),
        "ln_beta": jnp.zeros((hidden,), jnp.float32),
    }


# ---------------- pure-JAX reference for validation --------------------------
def reference(x, attention_mask, params, n_heads=N_HEADS, eps=LN_EPS):
    B, S, H = x.shape
    dh = H // n_heads
    with jax.default_matmul_precision("highest"):
        q = x @ params["wq"].T + params["bq"]
        k = x @ params["wk"].T + params["bk"]
        v = x @ params["wv"].T + params["bv"]
        q = q.reshape(B, S, n_heads, dh).transpose(0, 2, 1, 3)
        k = k.reshape(B, S, n_heads, dh).transpose(0, 2, 3, 1)
        v = v.reshape(B, S, n_heads, dh).transpose(0, 2, 1, 3)
        scores = (q @ k) / math.sqrt(dh) + attention_mask
        probs = jax.nn.softmax(scores, axis=-1)
        ctx = (probs @ v).transpose(0, 2, 1, 3).reshape(B, S, H)
        h = ctx @ params["wd"].T + params["bd"]
    y = h + x
    mu = y.mean(-1, keepdims=True)
    var = ((y - mu) ** 2).mean(-1, keepdims=True)
    return (y - mu) / jnp.sqrt(var + eps) * params["ln_gamma"] + params["ln_beta"]


if __name__ == "__main__":
    key = jax.random.PRNGKey(0)
    k_par, k_x = jax.random.split(key)

    params = init_params(k_par, HIDDEN)
    packed = pack_params(params)          # pre-pack once (not on the hot path)
    x = jax.random.normal(k_x, (BATCH, SEQ, HIDDEN), jnp.float32)

    # causal additive mask: 0 where attended, -1e9 where masked (broadcast over heads)
    causal = jnp.tril(jnp.ones((SEQ, SEQ), jnp.float32))
    attention_mask = jnp.where(causal[None, None, :, :] > 0, 0.0, -1e9)
    attention_mask = jnp.broadcast_to(attention_mask, (BATCH, 1, SEQ, SEQ))

    out = multi_head_attention(x, attention_mask, packed)
    out = jax.block_until_ready(out)

    ref = reference(x, attention_mask, params)
    assert out.shape == (BATCH, SEQ, HIDDEN)
    # Exact-reciprocal softmax + full-f32 math -> tight tolerance.
    assert jnp.allclose(out, ref, atol=1e-5, rtol=1e-5), "mismatch vs reference"

    print("KERNEL_OK")
</pallas_src>

<mosaic_0001>
module attributes {stable_mosaic.version = 11 : i64} {
  func.func @_mha_kernel(%arg0: memref<16x32xf32, #tpu.memory_space<vmem>>, %arg1: memref<16x16xf32, #tpu.memory_space<vmem>>, %arg2: memref<32x128xf32, #tpu.memory_space<vmem>>, %arg3: memref<2x128xf32, #tpu.memory_space<vmem>>, %arg4: memref<16x32xf32, #tpu.memory_space<vmem>>) attributes {dimension_semantics = [], scalar_prefetch = 0 : i64, scratch_operands = 0 : i64, tpu.core_type = #tpu.core_type<tc>} {
    %c0 = arith.constant 0 : index
    %c0_0 = arith.constant 0 : index
    %0 = vector.load %arg0[%c0, %c0_0] : memref<16x32xf32, #tpu.memory_space<vmem>>, vector<16x32xf32>
    %c0_1 = arith.constant 0 : index
    %c0_2 = arith.constant 0 : index
    %1 = vector.load %arg1[%c0_1, %c0_2] : memref<16x16xf32, #tpu.memory_space<vmem>>, vector<16x16xf32>
    %c0_3 = arith.constant 0 : index
    %c0_4 = arith.constant 0 : index
    %2 = vector.load %arg2[%c0_3, %c0_4] : memref<32x128xf32, #tpu.memory_space<vmem>>, vector<32x128xf32>
    %c0_5 = arith.constant 0 : index
    %c0_6 = arith.constant 0 : index
    %3 = vector.load %arg3[%c0_5, %c0_6] : memref<2x128xf32, #tpu.memory_space<vmem>>, vector<2x128xf32>
    %4 = vector.extract_strided_slice %2 {offsets = [0, 0], sizes = [32, 96], strides = [1, 1]} : vector<32x128xf32> to vector<32x96xf32>
    %5 = vector.extract_strided_slice %2 {offsets = [0, 96], sizes = [32, 32], strides = [1, 1]} : vector<32x128xf32> to vector<32x32xf32>
    %6 = vector.extract_strided_slice %3 {offsets = [0, 0], sizes = [1, 96], strides = [1, 1]} : vector<2x128xf32> to vector<1x96xf32>
    %7 = vector.extract_strided_slice %3 {offsets = [0, 96], sizes = [1, 32], strides = [1, 1]} : vector<2x128xf32> to vector<1x32xf32>
    %8 = vector.extract_strided_slice %3 {offsets = [1, 0], sizes = [1, 32], strides = [1, 1]} : vector<2x128xf32> to vector<1x32xf32>
    %9 = vector.extract_strided_slice %3 {offsets = [1, 32], sizes = [1, 32], strides = [1, 1]} : vector<2x128xf32> to vector<1x32xf32>
    %cst = arith.constant dense<0.000000e+00> : vector<16x96xf32>
    %10 = tpu.matmul %0, %4, %cst {dimension_numbers = #tpu.dot_dimension_numbers<[1], [0], [0], [1], [0, 0, 1, 1], [], []>} : vector<16x32xf32>, vector<32x96xf32>, vector<16x96xf32> -> vector<16x96xf32>
    %11 = vector.broadcast %6 : vector<1x96xf32> to vector<16x96xf32>
    %12 = arith.addf %10, %11 : vector<16x96xf32>
    %13 = vector.extract_strided_slice %12 {offsets = [0, 0], sizes = [16, 24], strides = [1, 1]} : vector<16x96xf32> to vector<16x24xf32>
    %14 = vector.extract_strided_slice %12 {offsets = [0, 24], sizes = [16, 24], strides = [1, 1]} : vector<16x96xf32> to vector<16x24xf32>
    %15 = vector.extract_strided_slice %12 {offsets = [0, 48], sizes = [16, 24], strides = [1, 1]} : vector<16x96xf32> to vector<16x24xf32>
    %16 = vector.extract_strided_slice %12 {offsets = [0, 72], sizes = [16, 24], strides = [1, 1]} : vector<16x96xf32> to vector<16x24xf32>
    %17 = vector.shape_cast %13 : vector<16x24xf32> to vector<1x16x24xf32>
    %18 = vector.shape_cast %14 : vector<16x24xf32> to vector<1x16x24xf32>
    %19 = vector.shape_cast %15 : vector<16x24xf32> to vector<1x16x24xf32>
    %20 = vector.shape_cast %16 : vector<16x24xf32> to vector<1x16x24xf32>
    %21 = tpu.concatenate %17, %18, %19, %20 in 0 : vector<1x16x24xf32>, vector<1x16x24xf32>, vector<1x16x24xf32>, vector<1x16x24xf32> -> vector<4x16x24xf32>
    %22 = vector.extract_strided_slice %21 {offsets = [0, 0, 0], sizes = [4, 16, 8], strides = [1, 1, 1]} : vector<4x16x24xf32> to vector<4x16x8xf32>
    %cst_7 = arith.constant 0.353553385 : f32
    %23 = vector.broadcast %cst_7 : f32 to vector<4x16x8xf32>
    %24 = arith.mulf %22, %23 : vector<4x16x8xf32>
    %25 = vector.extract_strided_slice %21 {offsets = [0, 0, 8], sizes = [4, 16, 8], strides = [1, 1, 1]} : vector<4x16x24xf32> to vector<4x16x8xf32>
    %26 = vector.extract_strided_slice %21 {offsets = [0, 0, 16], sizes = [4, 16, 8], strides = [1, 1, 1]} : vector<4x16x24xf32> to vector<4x16x8xf32>
    "tpu.trace_start"() <{level = 10 : i32, message = "hnd,hmd->hnm"}> : () -> ()
    %cst_8 = arith.constant dense<0.000000e+00> : vector<4x16x16xf32>
    %27 = tpu.matmul %24, %25, %cst_8 {dimension_numbers = #tpu.dot_dimension_numbers<[2], [2], [1], [1], [0, 0, 0, 1, 1, 1], [0], [0]>} : vector<4x16x8xf32>, vector<4x16x8xf32>, vector<4x16x16xf32> -> vector<4x16x16xf32>
    "tpu.trace_stop"() : () -> ()
    %28 = vector.shape_cast %1 : vector<16x16xf32> to vector<1x16x16xf32>
    %29 = vector.broadcast %28 : vector<1x16x16xf32> to vector<4x16x16xf32>
    %30 = arith.addf %27, %29 : vector<4x16x16xf32>
    %cst_9 = arith.constant dense<0xFF800000> : vector<4x16xf32>
    %31 = vector.multi_reduction <maximumf>, %30, %cst_9 [2] : vector<4x16x16xf32> to vector<4x16xf32>
    %32 = vector.shape_cast %31 : vector<4x16xf32> to vector<4x16x1xf32>
    %33 = vector.broadcast %32 : vector<4x16x1xf32> to vector<4x16x16xf32>
    %34 = arith.subf %30, %33 : vector<4x16x16xf32>
    %35 = math.exp %34 : vector<4x16x16xf32>
    %cst_10 = arith.constant dense<0.000000e+00> : vector<4x16xf32>
    %36 = vector.multi_reduction <add>, %35, %cst_10 [2] : vector<4x16x16xf32> to vector<4x16xf32>
    %37 = vector.shape_cast %36 : vector<4x16xf32> to vector<4x16x1xf32>
    %38 = tpu.reciprocal %37 : vector<4x16x1xf32> -> vector<4x16x1xf32>
    %39 = vector.broadcast %38 : vector<4x16x1xf32> to vector<4x16x16xf32>
    %40 = arith.mulf %35, %39 : vector<4x16x16xf32>
    "tpu.trace_start"() <{level = 10 : i32, message = "hnm,hmd->hnd"}> : () -> ()
    %cst_11 = arith.constant dense<0.000000e+00> : vector<4x16x8xf32>
    %41 = tpu.matmul %40, %26, %cst_11 {dimension_numbers = #tpu.dot_dimension_numbers<[2], [1], [1], [2], [0, 0, 0, 1, 1, 2], [0], [0]>} : vector<4x16x16xf32>, vector<4x16x8xf32>, vector<4x16x8xf32> -> vector<4x16x8xf32>
    "tpu.trace_stop"() : () -> ()
    %42 = vector.extract_strided_slice %41 {offsets = [0, 0, 0], sizes = [1, 16, 8], strides = [1, 1, 1]} : vector<4x16x8xf32> to vector<1x16x8xf32>
    %43 = vector.shape_cast %42 : vector<1x16x8xf32> to vector<16x8xf32>
    %44 = vector.extract_strided_slice %5 {offsets = [0, 0], sizes = [8, 32], strides = [1, 1]} : vector<32x32xf32> to vector<8x32xf32>
    %cst_12 = arith.constant dense<0.000000e+00> : vector<16x32xf32>
    %45 = tpu.matmul %43, %44, %cst_12 {dimension_numbers = #tpu.dot_dimension_numbers<[1], [0], [0], [1], [0, 0, 1, 1], [], []>} : vector<16x8xf32>, vector<8x32xf32>, vector<16x32xf32> -> vector<16x32xf32>
    %46 = vector.broadcast %7 : vector<1x32xf32> to vector<16x32xf32>
    %47 = arith.addf %46, %45 : vector<16x32xf32>
    %48 = vector.extract_strided_slice %41 {offsets = [1, 0, 0], sizes = [1, 16, 8], strides = [1, 1, 1]} : vector<4x16x8xf32> to vector<1x16x8xf32>
    %49 = vector.shape_cast %48 : vector<1x16x8xf32> to vector<16x8xf32>
    %50 = vector.extract_strided_slice %5 {offsets = [8, 0], sizes = [8, 32], strides = [1, 1]} : vector<32x32xf32> to vector<8x32xf32>
    %cst_13 = arith.constant dense<0.000000e+00> : vector<16x32xf32>
    %51 = tpu.matmul %49, %50, %cst_13 {dimension_numbers = #tpu.dot_dimension_numbers<[1], [0], [0], [1], [0, 0, 1, 1], [], []>} : vector<16x8xf32>, vector<8x32xf32>, vector<16x32xf32> -> vector<16x32xf32>
    %52 = arith.addf %47, %51 : vector<16x32xf32>
    %53 = vector.extract_strided_slice %41 {offsets = [2, 0, 0], sizes = [1, 16, 8], strides = [1, 1, 1]} : vector<4x16x8xf32> to vector<1x16x8xf32>
    %54 = vector.shape_cast %53 : vector<1x16x8xf32> to vector<16x8xf32>
    %55 = vector.extract_strided_slice %5 {offsets = [16, 0], sizes = [8, 32], strides = [1, 1]} : vector<32x32xf32> to vector<8x32xf32>
    %cst_14 = arith.constant dense<0.000000e+00> : vector<16x32xf32>
    %56 = tpu.matmul %54, %55, %cst_14 {dimension_numbers = #tpu.dot_dimension_numbers<[1], [0], [0], [1], [0, 0, 1, 1], [], []>} : vector<16x8xf32>, vector<8x32xf32>, vector<16x32xf32> -> vector<16x32xf32>
    %57 = arith.addf %52, %56 : vector<16x32xf32>
    %58 = vector.extract_strided_slice %41 {offsets = [3, 0, 0], sizes = [1, 16, 8], strides = [1, 1, 1]} : vector<4x16x8xf32> to vector<1x16x8xf32>
    %59 = vector.shape_cast %58 : vector<1x16x8xf32> to vector<16x8xf32>
    %60 = vector.extract_strided_slice %5 {offsets = [24, 0], sizes = [8, 32], strides = [1, 1]} : vector<32x32xf32> to vector<8x32xf32>
    %cst_15 = arith.constant dense<0.000000e+00> : vector<16x32xf32>
    %61 = tpu.matmul %59, %60, %cst_15 {dimension_numbers = #tpu.dot_dimension_numbers<[1], [0], [0], [1], [0, 0, 1, 1], [], []>} : vector<16x8xf32>, vector<8x32xf32>, vector<16x32xf32> -> vector<16x32xf32>
    %62 = arith.addf %57, %61 : vector<16x32xf32>
    %63 = arith.addf %62, %0 : vector<16x32xf32>
    %cst_16 = arith.constant dense<0.000000e+00> : vector<16xf32>
    %64 = vector.multi_reduction <add>, %63, %cst_16 [1] : vector<16x32xf32> to vector<16xf32>
    %65 = vector.shape_cast %64 : vector<16xf32> to vector<16x1xf32>
    %cst_17 = arith.constant 3.200000e+01 : f32
    %66 = vector.broadcast %cst_17 : f32 to vector<16x1xf32>
    %67 = arith.divf %65, %66 : vector<16x1xf32>
    %68 = vector.broadcast %67 : vector<16x1xf32> to vector<16x32xf32>
    %69 = arith.subf %63, %68 : vector<16x32xf32>
    %70 = arith.mulf %69, %69 : vector<16x32xf32>
    %cst_18 = arith.constant dense<0.000000e+00> : vector<16xf32>
    %71 = vector.multi_reduction <add>, %70, %cst_18 [1] : vector<16x32xf32> to vector<16xf32>
    %72 = vector.shape_cast %71 : vector<16xf32> to vector<16x1xf32>
    %cst_19 = arith.constant 3.200000e+01 : f32
    %73 = vector.broadcast %cst_19 : f32 to vector<16x1xf32>
    %74 = arith.divf %72, %73 : vector<16x1xf32>
    %75 = vector.broadcast %67 : vector<16x1xf32> to vector<16x32xf32>
    %76 = arith.subf %63, %75 : vector<16x32xf32>
    %cst_20 = arith.constant 9.99999996E-13 : f32
    %77 = vector.broadcast %cst_20 : f32 to vector<16x1xf32>
    %78 = arith.addf %74, %77 : vector<16x1xf32>
    %79 = math.rsqrt %78 : vector<16x1xf32>
    %80 = vector.broadcast %79 : vector<16x1xf32> to vector<16x32xf32>
    %81 = arith.mulf %76, %80 : vector<16x32xf32>
    %82 = vector.broadcast %8 : vector<1x32xf32> to vector<16x32xf32>
    %83 = arith.mulf %81, %82 : vector<16x32xf32>
    %84 = vector.broadcast %9 : vector<1x32xf32> to vector<16x32xf32>
    %85 = arith.addf %83, %84 : vector<16x32xf32>
    %c0_21 = arith.constant 0 : index
    %c0_22 = arith.constant 0 : index
    %86 = vector.load %arg4[%c0_21, %c0_22] : memref<16x32xf32, #tpu.memory_space<vmem>>, vector<16x32xf32>
    tpu.vector_store %arg4[%c0_21, %c0_22], %85 {strides = array<i32>} : memref<16x32xf32, #tpu.memory_space<vmem>>, vector<16x32xf32>,
    return
  }
}

</mosaic_0001>

<llo_original>
// kernel: multi_head_attention.1
$region0: #{multi_head_attention.1}
  #allocation0 [shape = 'u32[]', space=smem, size = 0x4, offset = 0x4, fixed_abs, tag = 'smem constant byte address 0x4 - core index']
  #allocation1 [shape = 'u32[144,128]{1,0:T(1,128)}', space=vmem, size = 0x12000, scoped, tag = 'internal scratch']
  %s0 = inlined_call_operand.vmem [shape: f32[16,32], index: 0, kind: input, shape index: {}]
  %s1 = inlined_call_operand.vmem [shape: f32[16,16], index: 1, kind: input, shape index: {}]
  %s2 = inlined_call_operand.vmem [shape: f32[32,128], index: 2, kind: input, shape index: {}]
  %s3 = inlined_call_operand.vmem [shape: f32[2,128], index: 3, kind: input, shape index: {}]
  %s4 = inlined_call_operand.hbm [shape: f32[16,32], index: 4, kind: output, shape index: {}]
  %s5 = sld [smem:[#allocation0]]
  $region26: #{multi_head_attention.1} parent=0
    _
  %s7 = ssub.s32 1, %s5
  %s8 = scalar_select 0, %s7, %s5
  $region1: #{multi_head_attention.1} parent=0
    #allocation2 [shape = 'u8[8192]{0}', space=vmem, size = 0x2000, scoped, tag = 'output window, operand 0, single buffered']
    #allocation3 [shape = 's32[1]{0}', space=sflag, size = 0x4, scoped, tag = 'scoped memory for multi_head_attention.1']
    %9 = vsyncpa [#allocation3], 0
    // Predicated region
    $region2: #{multi_head_attention.1} parent=1 // pred_check
      _
    $region3: #{multi_head_attention.1} parent=1 // pred_check_branch
      %11 = sbr.rel (0) target = $region5
    $region4: #{multi_head_attention.1} parent=1 // pred_region
      _
    $region5: #{multi_head_attention.1} parent=1 // pred_fallthru
      _
    // Predicated region
    $region6: #{multi_head_attention.1} parent=1 // pred_check
      _
    $region7: #{multi_head_attention.1} parent=1 // pred_check_branch
      %13 = sbr.rel (0) target = $region9
    $region8: #{multi_head_attention.1} parent=1 // pred_region
      _
    $region9: #{multi_head_attention.1} parent=1 // pred_fallthru
      _
    // Predicated region
    $region10: #{multi_head_attention.1} parent=1 // pred_check
      _
    $region11: #{multi_head_attention.1} parent=1 // pred_check_branch
      %15 = sbr.rel (0) target = $region13
    $region12: #{multi_head_attention.1} parent=1 // pred_region
      _
    $region13: #{multi_head_attention.1} parent=1 // pred_fallthru
      _
    // Predicated region
    $region14: #{multi_head_attention.1} parent=1 // pred_check
      _
    $region15: #{multi_head_attention.1} parent=1 // pred_check_branch
      %17 = sbr.rel (0) target = $region17
    $region16: #{multi_head_attention.1} parent=1 // pred_region
      _
    $region17: #{multi_head_attention.1} parent=1 // pred_fallthru
      _
    %v18 = vld [vmem:[%s0] sm:$0xff]
    %v19 = vld [vmem:[%s0 + $0x8] sm:$0xff]
    %v20 = vld [vmem:[%s1] sm:$0xff]
    %v21 = vld [vmem:[%s1 + $0x8] sm:$0xff]
    %v22 = vld [vmem:[%s2] sm:$0xff]
    %v23 = vld [vmem:[%s2 + $0x8] sm:$0xff]
    %v24 = vld [vmem:[%s2 + $0x10] sm:$0xff]
    %v25 = vld [vmem:[%s2 + $0x18] sm:$0xff]
    %v26 = vld [vmem:[%s3] sm:$0x3]
    %v27 = vlaneseq
    %v28 = vshrl.u32 %v27, 7
    %v29 = vsub.s32 0, %v28
    %v30 = vrot.slane %v26, %v29
    %vm31 = vcmask 261120
    %v33 = vsel %vm31, %v18, 0
    %v36 = vsel %vm31, %v19, 0
    %38 = vmatprep.subr.mxu0 0.0
    %39 = vmatpush1.msra.mxu0 %v22
    %40 = vmatprep.subr.mxu0 0.0
    %41 = vmatpush1.msra.mxu0 %v23
    %42 = vmatprep.subr.mxu0 0.0
    %43 = vmatpush1.msra.mxu0 %v24
    %44 = vmatprep.subr.mxu0 0.0
    %45 = vmatpush1.msra.mxu0 %v25
    %46 = vmatprep.subr.mxu0 0.0
    %47 = vmatpush1.msra.mxu0 0.0
    %48 = vmatprep.subr.mxu0 0.0
    %49 = vmatpush1.msra.mxu0 0.0
    %50 = vmatprep.subr.mxu0 0.0
    %51 = vmatpush1.msra.mxu0 0.0
    %52 = vmatprep.subr.mxu0 0.0
    %53 = vmatpush1.msra.mxu0 0.0
    %54 = vmatprep.subr.mxu0 0.0
    %55 = vmatpush1.msra.mxu0 0.0
    %56 = vmatprep.subr.mxu0 0.0
    %57 = vmatpush1.msra.mxu0 0.0
    %58 = vmatprep.subr.mxu0 0.0
    %59 = vmatpush1.msra.mxu0 0.0
    %60 = vmatprep.subr.mxu0 0.0
    %61 = vmatpush1.msra.mxu0 0.0
    %62 = vmatprep.subr.mxu0 0.0
    %63 = vmatpush1.msra.mxu0 0.0
    %64 = vmatprep.subr.mxu0 0.0
    %65 = vmatpush1.msra.mxu0 0.0
    %66 = vmatprep.subr.mxu0 0.0
    %67 = vmatpush1.msra.mxu0 0.0
    %68 = vmatprep.subr.mxu0 0.0
    %69 = vmatpush1.msra.mxu0 0.0
    %70 = vmatprep.subr.mxu0 0.0
    %71 = vmatpush1.msra.mxu0 0.0
    %72 = vmatprep.subr.mxu0 0.0
    %73 = vmatpush1.msra.mxu0 0.0
    %74 = vmatprep.subr.mxu0 0.0
    %75 = vmatpush1.msra.mxu0 0.0
    %76 = vmatprep.subr.mxu0 0.0
    %77 = vmatpush1.msra.mxu0 0.0
    %78 = vmatprep.subr.mxu0 0.0
    %79 = vmatpush1.msra.mxu0 0.0
    %80 = vmatprep.subr.mxu0 0.0
    %81 = vmatpush1.msra.mxu0 0.0
    %82 = vmatprep.subr.mxu0 0.0
    %83 = vmatpush1.msra.mxu0 0.0
    %84 = vmatprep.subr.mxu0 0.0
    %85 = vmatpush1.msra.mxu0 0.0
    %86 = vmatprep.subr.mxu0 0.0
    %87 = vmatpush1.msra.mxu0 0.0
    %88 = vmatprep.subr.mxu0 0.0
    %89 = vmatpush1.msra.mxu0 0.0
    %90 = vmatprep.subr.mxu0 0.0
    %91 = vmatpush1.msra.mxu0 0.0
    %92 = vmatprep.subr.mxu0 0.0
    %93 = vmatpush1.msra.mxu0 0.0
    %94 = vmatprep.subr.mxu0 0.0
    %95 = vmatpush1.msra.mxu0 0.0
    %96 = vmatprep.subr.mxu0 0.0
    %97 = vmatpush1.msra.mxu0 0.0
    %98 = vmatprep.subr.mxu0 0.0
    %99 = vmatpush1.msra.mxu0 0.0
    %100 = vmatprep.subr.mxu0 0.0
    %101 = vmatpush1.msra.mxu0 0.0
    %102 = vmatprep.mubr.f32.mxu0 0.0
    %103 = vmatmul.mubr.f32.gmra.mrb[0].mxu0 %v33
    %v104 = vpop.f32.mrb[0].mxu0
    %v105 = vadd.f32 %v30, %v104
    %v106 = vpop.f32.mrb[0].mxu0
    %107 = vmatprep.mubr.f32.mxu0 0.0
    %108 = vmatmul.mubr.f32.gmra.mrb[0].mxu0 %v36
    %v109 = vpop.f32.mrb[0].mxu0
    %v110 = vadd.f32 %v30, %v109
    %v111 = vpop.f32.mrb[0].mxu0
    %112 = vdwg.mxu0
    %115 = vrot.lane.b32.xlu0 %v105, 104
    %v116 = vpop.permute.xlu0 %115
    %117 = vrot.lane.b32.xlu0 %v110, 104
    %v118 = vpop.permute.xlu0 %117
    %121 = vrot.lane.b32.xlu0 %v105, 80
    %v122 = vpop.permute.xlu0 %121
    %123 = vrot.lane.b32.xlu0 %v110, 80
    %v124 = vpop.permute.xlu0 %123
    %127 = vrot.lane.b32.xlu0 %v105, 56
    %v128 = vpop.permute.xlu0 %127
    %129 = vrot.lane.b32.xlu0 %v110, 56
    %v130 = vpop.permute.xlu0 %129
    %v133 = vmul.f32 %v105, 0.35355338
    %v134 = vmul.f32 %v110, 0.35355338
    %v135 = vmul.f32 %v116, 0.35355338
    %v136 = vmul.f32 %v118, 0.35355338
    %v137 = vmul.f32 %v122, 0.35355338
    %v138 = vmul.f32 %v124, 0.35355338
    %v139 = vmul.f32 %v128, 0.35355338
    %v140 = vmul.f32 %v130, 0.35355338
    %141 = vrot.lane.b32.xlu0 %v105, 120
    %v142 = vpop.permute.xlu0 %141
    %143 = vrot.lane.b32.xlu0 %v110, 120
    %v144 = vpop.permute.xlu0 %143
    %vm145 = vcmask 64512
    %v147 = vsel %vm145, %v133, 0
    %v150 = vsel %vm145, %v134, 0
    %v152 = vsel %vm145, %v142, 0
    %v154 = vsel %vm145, %v144, 0
    %156 = vmatprep.subr.mxu0 0.0
    %157 = vmatpush1.xpose.msra.mxu0 %v152
    %158 = vmatprep.subr.mxu0 0.0
    %159 = vmatpush1.xpose.msra.mxu0 %v154
    %160 = vmatprep.subr.mxu0 0.0
    %161 = vmatpush1.xpose.msra.mxu0 0.0
    %162 = vmatprep.subr.mxu0 0.0
    %163 = vmatpush1.xpose.msra.mxu0 0.0
    %164 = vmatprep.subr.mxu0 0.0
    %165 = vmatpush1.xpose.msra.mxu0 0.0
    %166 = vmatprep.subr.mxu0 0.0
    %167 = vmatpush1.xpose.msra.mxu0 0.0
    %168 = vmatprep.subr.mxu0 0.0
    %169 = vmatpush1.xpose.msra.mxu0 0.0
    %170 = vmatprep.subr.mxu0 0.0
    %171 = vmatpush1.xpose.msra.mxu0 0.0
    %172 = vmatprep.subr.mxu0 0.0
    %173 = vmatpush1.xpose.msra.mxu0 0.0
    %174 = vmatprep.subr.mxu0 0.0
    %175 = vmatpush1.xpose.msra.mxu0 0.0
    %176 = vmatprep.subr.mxu0 0.0
    %177 = vmatpush1.xpose.msra.mxu0 0.0
    %178 = vmatprep.subr.mxu0 0.0
    %179 = vmatpush1.xpose.msra.mxu0 0.0
    %180 = vmatprep.subr.mxu0 0.0
    %181 = vmatpush1.xpose.msra.mxu0 0.0
    %182 = vmatprep.subr.mxu0 0.0
    %183 = vmatpush1.xpose.msra.mxu0 0.0
    %184 = vmatprep.subr.mxu0 0.0
    %185 = vmatpush1.xpose.msra.mxu0 0.0
    %186 = vmatprep.subr.mxu0 0.0
    %187 = vmatpush1.xpose.msra.mxu0 0.0
    %188 = vmatprep.subr.mxu0 0.0
    %189 = vmatpush1.xpose.msra.mxu0 0.0
    %190 = vmatprep.subr.mxu0 0.0
    %191 = vmatpush1.xpose.msra.mxu0 0.0
    %192 = vmatprep.subr.mxu0 0.0
    %193 = vmatpush1.xpose.msra.mxu0 0.0
    %194 = vmatprep.subr.mxu0 0.0
    %195 = vmatpush1.xpose.msra.mxu0 0.0
    %196 = vmatprep.subr.mxu0 0.0
    %197 = vmatpush1.xpose.msra.mxu0 0.0
    %198 = vmatprep.subr.mxu0 0.0
    %199 = vmatpush1.xpose.msra.mxu0 0.0
    %200 = vmatprep.subr.mxu0 0.0
    %201 = vmatpush1.xpose.msra.mxu0 0.0
    %202 = vmatprep.subr.mxu0 0.0
    %203 = vmatpush1.xpose.msra.mxu0 0.0
    %204 = vmatprep.subr.mxu0 0.0
    %205 = vmatpush1.xpose.msra.mxu0 0.0
    %206 = vmatprep.subr.mxu0 0.0
    %207 = vmatpush1.xpose.msra.mxu0 0.0
    %208 = vmatprep.subr.mxu0 0.0
    %209 = vmatpush1.xpose.msra.mxu0 0.0
    %210 = vmatprep.subr.mxu0 0.0
    %211 = vmatpush1.xpose.msra.mxu0 0.0
    %212 = vmatprep.subr.mxu0 0.0
    %213 = vmatpush1.xpose.msra.mxu0 0.0
    %214 = vmatprep.subr.mxu0 0.0
    %215 = vmatpush1.xpose.msra.mxu0 0.0
    %216 = vmatprep.subr.mxu0 0.0
    %217 = vmatpush1.xpose.msra.mxu0 0.0
    %218 = vmatprep.subr.mxu0 0.0
    %219 = vmatpush1.xpose.msra.mxu0 0.0
    %220 = vmatprep.mubr.f32.mxu0 0.0
    %221 = vmatmul.mubr.f32.gmra.mrb[0].mxu0 %v147
    %v222 = vpop.f32.mrb[0].mxu0
    %v223 = vadd.f32 %v20, %v222
    %v224 = vpop.f32.mrb[0].mxu0
    %225 = vmatprep.mubr.f32.mxu0 0.0
    %226 = vmatmul.mubr.f32.gmra.mrb[0].mxu0 %v150
    %v227 = vpop.f32.mrb[0].mxu0
    %v228 = vadd.f32 %v21, %v227
    %v229 = vpop.f32.mrb[0].mxu0
    %230 = vdwg.mxu0
    %231 = vrot.lane.b32.xlu0 %v116, 120
    %v232 = vpop.permute.xlu0 %231
    %233 = vrot.lane.b32.xlu0 %v118, 120
    %v234 = vpop.permute.xlu0 %233
    %v236 = vsel %vm145, %v135, 0
    %v239 = vsel %vm145, %v136, 0
    %v241 = vsel %vm145, %v232, 0
    %v243 = vsel %vm145, %v234, 0
    %245 = vmatprep.subr.mxu0 0.0
    %246 = vmatpush1.xpose.msra.mxu0 %v241
    %247 = vmatprep.subr.mxu0 0.0
    %248 = vmatpush1.xpose.msra.mxu0 %v243
    %249 = vmatprep.subr.mxu0 0.0
    %250 = vmatpush1.xpose.msra.mxu0 0.0
    %251 = vmatprep.subr.mxu0 0.0
    %252 = vmatpush1.xpose.msra.mxu0 0.0
    %253 = vmatprep.subr.mxu0 0.0
    %254 = vmatpush1.xpose.msra.mxu0 0.0
    %255 = vmatprep.subr.mxu0 0.0
    %256 = vmatpush1.xpose.msra.mxu0 0.0
    %257 = vmatprep.subr.mxu0 0.0
    %258 = vmatpush1.xpose.msra.mxu0 0.0
    %259 = vmatprep.subr.mxu0 0.0
    %260 = vmatpush1.xpose.msra.mxu0 0.0
    %261 = vmatprep.subr.mxu0 0.0
    %262 = vmatpush1.xpose.msra.mxu0 0.0
    %263 = vmatprep.subr.mxu0 0.0
    %264 = vmatpush1.xpose.msra.mxu0 0.0
    %265 = vmatprep.subr.mxu0 0.0
    %266 = vmatpush1.xpose.msra.mxu0 0.0
    %267 = vmatprep.subr.mxu0 0.0
    %268 = vmatpush1.xpose.msra.mxu0 0.0
    %269 = vmatprep.subr.mxu0 0.0
    %270 = vmatpush1.xpose.msra.mxu0 0.0
    %271 = vmatprep.subr.mxu0 0.0
    %272 = vmatpush1.xpose.msra.mxu0 0.0
    %273 = vmatprep.subr.mxu0 0.0
    %274 = vmatpush1.xpose.msra.mxu0 0.0
    %275 = vmatprep.subr.mxu0 0.0
    %276 = vmatpush1.xpose.msra.mxu0 0.0
    %277 = vmatprep.subr.mxu0 0.0
    %278 = vmatpush1.xpose.msra.mxu0 0.0
    %279 = vmatprep.subr.mxu0 0.0
    %280 = vmatpush1.xpose.msra.mxu0 0.0
    %281 = vmatprep.subr.mxu0 0.0
    %282 = vmatpush1.xpose.msra.mxu0 0.0
    %283 = vmatprep.subr.mxu0 0.0
    %284 = vmatpush1.xpose.msra.mxu0 0.0
    %285 = vmatprep.subr.mxu0 0.0
    %286 = vmatpush1.xpose.msra.mxu0 0.0
    %287 = vmatprep.subr.mxu0 0.0
    %288 = vmatpush1.xpose.msra.mxu0 0.0
    %289 = vmatprep.subr.mxu0 0.0
    %290 = vmatpush1.xpose.msra.mxu0 0.0
    %291 = vmatprep.subr.mxu0 0.0
    %292 = vmatpush1.xpose.msra.mxu0 0.0
    %293 = vmatprep.subr.mxu0 0.0
    %294 = vmatpush1.xpose.msra.mxu0 0.0
    %295 = vmatprep.subr.mxu0 0.0
    %296 = vmatpush1.xpose.msra.mxu0 0.0
    %297 = vmatprep.subr.mxu0 0.0
    %298 = vmatpush1.xpose.msra.mxu0 0.0
    %299 = vmatprep.subr.mxu0 0.0
    %300 = vmatpush1.xpose.msra.mxu0 0.0
    %301 = vmatprep.subr.mxu0 0.0
    %302 = vmatpush1.xpose.msra.mxu0 0.0
    %303 = vmatprep.subr.mxu0 0.0
    %304 = vmatpush1.xpose.msra.mxu0 0.0
    %305 = vmatprep.subr.mxu0 0.0
    %306 = vmatpush1.xpose.msra.mxu0 0.0
    %307 = vmatprep.subr.mxu0 0.0
    %308 = vmatpush1.xpose.msra.mxu0 0.0
    %309 = vmatprep.mubr.f32.mxu0 0.0
    %310 = vmatmul.mubr.f32.gmra.mrb[0].mxu0 %v236
    %v311 = vpop.f32.mrb[0].mxu0
    %v312 = vadd.f32 %v20, %v311
    %v313 = vpop.f32.mrb[0].mxu0
    %314 = vmatprep.mubr.f32.mxu0 0.0
    %315 = vmatmul.mubr.f32.gmra.mrb[0].mxu0 %v239
    %v316 = vpop.f32.mrb[0].mxu0
    %v317 = vadd.f32 %v21, %v316
    %v318 = vpop.f32.mrb[0].mxu0
    %319 = vdwg.mxu0
    %320 = vrot.lane.b32.xlu0 %v122, 120
    %v321 = vpop.permute.xlu0 %320
    %322 = vrot.lane.b32.xlu0 %v124, 120
    %v323 = vpop.permute.xlu0 %322
    %v325 = vsel %vm145, %v137, 0
    %v328 = vsel %vm145, %v138, 0
    %v330 = vsel %vm145, %v321, 0
    %v332 = vsel %vm145, %v323, 0
    %334 = vmatprep.subr.mxu0 0.0
    %335 = vmatpush1.xpose.msra.mxu0 %v330
    %336 = vmatprep.subr.mxu0 0.0
    %337 = vmatpush1.xpose.msra.mxu0 %v332
    %338 = vmatprep.subr.mxu0 0.0
    %339 = vmatpush1.xpose.msra.mxu0 0.0
    %340 = vmatprep.subr.mxu0 0.0
    %341 = vmatpush1.xpose.msra.mxu0 0.0
    %342 = vmatprep.subr.mxu0 0.0
    %343 = vmatpush1.xpose.msra.mxu0 0.0
    %344 = vmatprep.subr.mxu0 0.0
    %345 = vmatpush1.xpose.msra.mxu0 0.0
    %346 = vmatprep.subr.mxu0 0.0
    %347 = vmatpush1.xpose.msra.mxu0 0.0
    %348 = vmatprep.subr.mxu0 0.0
    %349 = vmatpush1.xpose.msra.mxu0 0.0
    %350 = vmatprep.subr.mxu0 0.0
    %351 = vmatpush1.xpose.msra.mxu0 0.0
    %352 = vmatprep.subr.mxu0 0.0
    %353 = vmatpush1.xpose.msra.mxu0 0.0
    %354 = vmatprep.subr.mxu0 0.0
    %355 = vmatpush1.xpose.msra.mxu0 0.0
    %356 = vmatprep.subr.mxu0 0.0
    %357 = vmatpush1.xpose.msra.mxu0 0.0
    %358 = vmatprep.subr.mxu0 0.0
    %359 = vmatpush1.xpose.msra.mxu0 0.0
    %360 = vmatprep.subr.mxu0 0.0
    %361 = vmatpush1.xpose.msra.mxu0 0.0
    %362 = vmatprep.subr.mxu0 0.0
    %363 = vmatpush1.xpose.msra.mxu0 0.0
    %364 = vmatprep.subr.mxu0 0.0
    %365 = vmatpush1.xpose.msra.mxu0 0.0
    %366 = vmatprep.subr.mxu0 0.0
    %367 = vmatpush1.xpose.msra.mxu0 0.0
    %368 = vmatprep.subr.mxu0 0.0
    %369 = vmatpush1.xpose.msra.mxu0 0.0
    %370 = vmatprep.subr.mxu0 0.0
    %371 = vmatpush1.xpose.msra.mxu0 0.0
    %372 = vmatprep.subr.mxu0 0.0
    %373 = vmatpush1.xpose.msra.mxu0 0.0
    %374 = vmatprep.subr.mxu0 0.0
    %375 = vmatpush1.xpose.msra.mxu0 0.0
    %376 = vmatprep.subr.mxu0 0.0
    %377 = vmatpush1.xpose.msra.mxu0 0.0
    %378 = vmatprep.subr.mxu0 0.0
    %379 = vmatpush1.xpose.msra.mxu0 0.0
    %380 = vmatprep.subr.mxu0 0.0
    %381 = vmatpush1.xpose.msra.mxu0 0.0
    %382 = vmatprep.subr.mxu0 0.0
    %383 = vmatpush1.xpose.msra.mxu0 0.0
    %384 = vmatprep.subr.mxu0 0.0
    %385 = vmatpush1.xpose.msra.mxu0 0.0
    %386 = vmatprep.subr.mxu0 0.0
    %387 = vmatpush1.xpose.msra.mxu0 0.0
    %388 = vmatprep.subr.mxu0 0.0
    %389 = vmatpush1.xpose.msra.mxu0 0.0
    %390 = vmatprep.subr.mxu0 0.0
    %391 = vmatpush1.xpose.msra.mxu0 0.0
    %392 = vmatprep.subr.mxu0 0.0
    %393 = vmatpush1.xpose.msra.mxu0 0.0
    %394 = vmatprep.subr.mxu0 0.0
    %395 = vmatpush1.xpose.msra.mxu0 0.0
    %396 = vmatprep.subr.mxu0 0.0
    %397 = vmatpush1.xpose.msra.mxu0 0.0
    %398 = vmatprep.mubr.f32.mxu0 0.0
    %399 = vmatmul.mubr.f32.gmra.mrb[0].mxu0 %v325
    %v400 = vpop.f32.mrb[0].mxu0
    %v401 = vadd.f32 %v20, %v400
    %v402 = vpop.f32.mrb[0].mxu0
    %403 = vmatprep.mubr.f32.mxu0 0.0
    %404 = vmatmul.mubr.f32.gmra.mrb[0].mxu0 %v328
    %v405 = vpop.f32.mrb[0].mxu0
    %v406 = vadd.f32 %v21, %v405
    %v407 = vpop.f32.mrb[0].mxu0
    %408 = vdwg.mxu0
    %409 = vrot.lane.b32.xlu0 %v128, 120
    %v410 = vpop.permute.xlu0 %409
    %411 = vrot.lane.b32.xlu0 %v130, 120
    %v412 = vpop.permute.xlu0 %411
    %v414 = vsel %vm145, %v139, 0
    %v417 = vsel %vm145, %v140, 0
    %v419 = vsel %vm145, %v410, 0
    %v421 = vsel %vm145, %v412, 0
    %423 = vmatprep.subr.mxu0 0.0
    %424 = vmatpush1.xpose.msra.mxu0 %v419
    %425 = vmatprep.subr.mxu0 0.0
    %426 = vmatpush1.xpose.msra.mxu0 %v421
    %427 = vmatprep.subr.mxu0 0.0
    %428 = vmatpush1.xpose.msra.mxu0 0.0
    %429 = vmatprep.subr.mxu0 0.0
    %430 = vmatpush1.xpose.msra.mxu0 0.0
    %431 = vmatprep.subr.mxu0 0.0
    %432 = vmatpush1.xpose.msra.mxu0 0.0
    %433 = vmatprep.subr.mxu0 0.0
    %434 = vmatpush1.xpose.msra.mxu0 0.0
    %435 = vmatprep.subr.mxu0 0.0
    %436 = vmatpush1.xpose.msra.mxu0 0.0
    %437 = vmatprep.subr.mxu0 0.0
    %438 = vmatpush1.xpose.msra.mxu0 0.0
    %439 = vmatprep.subr.mxu0 0.0
    %440 = vmatpush1.xpose.msra.mxu0 0.0
    %441 = vmatprep.subr.mxu0 0.0
    %442 = vmatpush1.xpose.msra.mxu0 0.0
    %443 = vmatprep.subr.mxu0 0.0
    %444 = vmatpush1.xpose.msra.mxu0 0.0
    %445 = vmatprep.subr.mxu0 0.0
    %446 = vmatpush1.xpose.msra.mxu0 0.0
    %447 = vmatprep.subr.mxu0 0.0
    %448 = vmatpush1.xpose.msra.mxu0 0.0
    %449 = vmatprep.subr.mxu0 0.0
    %450 = vmatpush1.xpose.msra.mxu0 0.0
    %451 = vmatprep.subr.mxu0 0.0
    %452 = vmatpush1.xpose.msra.mxu0 0.0
    %453 = vmatprep.subr.mxu0 0.0
    %454 = vmatpush1.xpose.msra.mxu0 0.0
    %455 = vmatprep.subr.mxu0 0.0
    %456 = vmatpush1.xpose.msra.mxu0 0.0
    %457 = vmatprep.subr.mxu0 0.0
    %458 = vmatpush1.xpose.msra.mxu0 0.0
    %459 = vmatprep.subr.mxu0 0.0
    %460 = vmatpush1.xpose.msra.mxu0 0.0
    %461 = vmatprep.subr.mxu0 0.0
    %462 = vmatpush1.xpose.msra.mxu0 0.0
    %463 = vmatprep.subr.mxu0 0.0
    %464 = vmatpush1.xpose.msra.mxu0 0.0
    %465 = vmatprep.subr.mxu0 0.0
    %466 = vmatpush1.xpose.msra.mxu0 0.0
    %467 = vmatprep.subr.mxu0 0.0
    %468 = vmatpush1.xpose.msra.mxu0 0.0
    %469 = vmatprep.subr.mxu0 0.0
    %470 = vmatpush1.xpose.msra.mxu0 0.0
    %471 = vmatprep.subr.mxu0 0.0
    %472 = vmatpush1.xpose.msra.mxu0 0.0
    %473 = vmatprep.subr.mxu0 0.0
    %474 = vmatpush1.xpose.msra.mxu0 0.0
    %475 = vmatprep.subr.mxu0 0.0
    %476 = vmatpush1.xpose.msra.mxu0 0.0
    %477 = vmatprep.subr.mxu0 0.0
    %478 = vmatpush1.xpose.msra.mxu0 0.0
    %479 = vmatprep.subr.mxu0 0.0
    %480 = vmatpush1.xpose.msra.mxu0 0.0
    %481 = vmatprep.subr.mxu0 0.0
    %482 = vmatpush1.xpose.msra.mxu0 0.0
    %483 = vmatprep.subr.mxu0 0.0
    %484 = vmatpush1.xpose.msra.mxu0 0.0
    %485 = vmatprep.subr.mxu0 0.0
    %486 = vmatpush1.xpose.msra.mxu0 0.0
    %487 = vmatprep.mubr.f32.mxu0 0.0
    %488 = vmatmul.mubr.f32.gmra.mrb[0].mxu0 %v414
    %v489 = vpop.f32.mrb[0].mxu0
    %v490 = vadd.f32 %v20, %v489
    %v491 = vpop.f32.mrb[0].mxu0
    %492 = vmatprep.mubr.f32.mxu0 0.0
    %493 = vmatmul.mubr.f32.gmra.mrb[0].mxu0 %v417
    %v494 = vpop.f32.mrb[0].mxu0
    %v495 = vadd.f32 %v21, %v494
    %v496 = vpop.f32.mrb[0].mxu0
    %497 = vdwg.mxu0
    %vm498 = vcmask 130048
    %v499 = vsel %vm498, %v223, -inf
    %500 = vmax.xlane.f32.xlu0 %v499
    %v501 = vpop.xlane.xlu0 %500
    %v502 = vsel %vm498, %v228, -inf
    %503 = vmax.xlane.f32.xlu0 %v502
    %v504 = vpop.xlane.xlu0 %503
    %v505 = vsel %vm498, %v312, -inf
    %506 = vmax.xlane.f32.xlu0 %v505
    %v507 = vpop.xlane.xlu0 %506
    %v508 = vsel %vm498, %v317, -inf
    %509 = vmax.xlane.f32.xlu0 %v508
    %v510 = vpop.xlane.xlu0 %509
    %v511 = vsel %vm498, %v401, -inf
    %512 = vmax.xlane.f32.xlu0 %v511
    %v513 = vpop.xlane.xlu0 %512
    %v514 = vsel %vm498, %v406, -inf
    %515 = vmax.xlane.f32.xlu0 %v514
    %v516 = vpop.xlane.xlu0 %515
    %v517 = vsel %vm498, %v490, -inf
    %518 = vmax.xlane.f32.xlu0 %v517
    %v519 = vpop.xlane.xlu0 %518
    %v520 = vsel %vm498, %v495, -inf
    %521 = vmax.xlane.f32.xlu0 %v520
    %v522 = vpop.xlane.xlu0 %521
    %v523 = vsub.f32 %v223, %v501
    %v524 = vsub.f32 %v228, %v504
    %v525 = vsub.f32 %v312, %v507
    %v526 = vsub.f32 %v317, %v510
    %v527 = vsub.f32 %v401, %v513
    %v528 = vsub.f32 %v406, %v516
    %v529 = vsub.f32 %v490, %v519
    %v530 = vsub.f32 %v495, %v522
    %v531 = vmul.f32 %v523, 1.442695
    %v532 = vpow.pop %v531
    %v533 = vmul.f32 %v524, 1.442695
    %v534 = vpow.pop %v533
    %v535 = vmul.f32 %v525, 1.442695
    %v536 = vpow.pop %v535
    %v537 = vmul.f32 %v526, 1.442695
    %v538 = vpow.pop %v537
    %v539 = vmul.f32 %v527, 1.442695
    %v540 = vpow.pop %v539
    %v541 = vmul.f32 %v528, 1.442695
    %v542 = vpow.pop %v541
    %v543 = vmul.f32 %v529, 1.442695
    %v544 = vpow.pop %v543
    %v545 = vmul.f32 %v530, 1.442695
    %v546 = vpow.pop %v545
    %v547 = vsel %vm498, %v532, 0.0
    %548 = vadd.xlane.f32.xlu0 %v547
    %v549 = vpop.xlane.xlu0 %548
    %v550 = vsel %vm498, %v534, 0.0
    %551 = vadd.xlane.f32.xlu0 %v550
    %v552 = vpop.xlane.xlu0 %551
    %v553 = vsel %vm498, %v536, 0.0
    %554 = vadd.xlane.f32.xlu0 %v553
    %v555 = vpop.xlane.xlu0 %554
    %v556 = vsel %vm498, %v538, 0.0
    %557 = vadd.xlane.f32.xlu0 %v556
    %v558 = vpop.xlane.xlu0 %557
    %v559 = vsel %vm498, %v540, 0.0
    %560 = vadd.xlane.f32.xlu0 %v559
    %v561 = vpop.xlane.xlu0 %560
    %v562 = vsel %vm498, %v542, 0.0
    %563 = vadd.xlane.f32.xlu0 %v562
    %v564 = vpop.xlane.xlu0 %563
    %v565 = vsel %vm498, %v544, 0.0
    %566 = vadd.xlane.f32.xlu0 %v565
    %v567 = vpop.xlane.xlu0 %566
    %v568 = vsel %vm498, %v546, 0.0
    %569 = vadd.xlane.f32.xlu0 %v568
    %v570 = vpop.xlane.xlu0 %569
    %v571 = vrcp.pop %v549
    %v572 = vrcp.pop %v552
    %v573 = vrcp.pop %v555
    %v574 = vrcp.pop %v558
    %v575 = vrcp.pop %v561
    %v576 = vrcp.pop %v564
    %v577 = vrcp.pop %v567
    %v578 = vrcp.pop %v570
    %v579 = vmul.f32 %v532, %v571
    %v580 = vmul.f32 %v534, %v572
    %v581 = vmul.f32 %v536, %v573
    %v582 = vmul.f32 %v538, %v574
    %v583 = vmul.f32 %v540, %v575
    %v584 = vmul.f32 %v542, %v576
    %v585 = vmul.f32 %v544, %v577
    %v586 = vmul.f32 %v546, %v578
    %587 = vrot.lane.b32.xlu0 %v105, 112
    %v588 = vpop.permute.xlu0 %587
    %589 = vrot.lane.b32.xlu0 %v110, 112
    %v590 = vpop.permute.xlu0 %589
    %v594 = vsel %vm498, %v579, 0
    %v597 = vsel %vm498, %v580, 0
    %599 = vmatprep.subr.mxu0 0.0
    %600 = vmatpush1.msra.mxu0 %v588
    %601 = vmatprep.subr.mxu0 0.0
    %602 = vmatpush1.msra.mxu0 %v590
    %603 = vmatprep.subr.mxu0 0.0
    %604 = vmatpush1.msra.mxu0 0.0
    %605 = vmatprep.subr.mxu0 0.0
    %606 = vmatpush1.msra.mxu0 0.0
    %607 = vmatprep.subr.mxu0 0.0
    %608 = vmatpush1.msra.mxu0 0.0
    %609 = vmatprep.subr.mxu0 0.0
    %610 = vmatpush1.msra.mxu0 0.0
    %611 = vmatprep.subr.mxu0 0.0
    %612 = vmatpush1.msra.mxu0 0.0
    %613 = vmatprep.subr.mxu0 0.0
    %614 = vmatpush1.msra.mxu0 0.0
    %615 = vmatprep.subr.mxu0 0.0
    %616 = vmatpush1.msra.mxu0 0.0
    %617 = vmatprep.subr.mxu0 0.0
    %618 = vmatpush1.msra.mxu0 0.0
    %619 = vmatprep.subr.mxu0 0.0
    %620 = vmatpush1.msra.mxu0 0.0
    %621 = vmatprep.subr.mxu0 0.0
    %622 = vmatpush1.msra.mxu0 0.0
    %623 = vmatprep.subr.mxu0 0.0
    %624 = vmatpush1.msra.mxu0 0.0
    %625 = vmatprep.subr.mxu0 0.0
    %626 = vmatpush1.msra.mxu0 0.0
    %627 = vmatprep.subr.mxu0 0.0
    %628 = vmatpush1.msra.mxu0 0.0
    %629 = vmatprep.subr.mxu0 0.0
    %630 = vmatpush1.msra.mxu0 0.0
    %631 = vmatprep.subr.mxu0 0.0
    %632 = vmatpush1.msra.mxu0 0.0
    %633 = vmatprep.subr.mxu0 0.0
    %634 = vmatpush1.msra.mxu0 0.0
    %635 = vmatprep.subr.mxu0 0.0
    %636 = vmatpush1.msra.mxu0 0.0
    %637 = vmatprep.subr.mxu0 0.0
    %638 = vmatpush1.msra.mxu0 0.0
    %639 = vmatprep.subr.mxu0 0.0
    %640 = vmatpush1.msra.mxu0 0.0
    %641 = vmatprep.subr.mxu0 0.0
    %642 = vmatpush1.msra.mxu0 0.0
    %643 = vmatprep.subr.mxu0 0.0
    %644 = vmatpush1.msra.mxu0 0.0
    %645 = vmatprep.subr.mxu0 0.0
    %646 = vmatpush1.msra.mxu0 0.0
    %647 = vmatprep.subr.mxu0 0.0
    %648 = vmatpush1.msra.mxu0 0.0
    %649 = vmatprep.subr.mxu0 0.0
    %650 = vmatpush1.msra.mxu0 0.0
    %651 = vmatprep.subr.mxu0 0.0
    %652 = vmatpush1.msra.mxu0 0.0
    %653 = vmatprep.subr.mxu0 0.0
    %654 = vmatpush1.msra.mxu0 0.0
    %655 = vmatprep.subr.mxu0 0.0
    %656 = vmatpush1.msra.mxu0 0.0
    %657 = vmatprep.subr.mxu0 0.0
    %658 = vmatpush1.msra.mxu0 0.0
    %659 = vmatprep.subr.mxu0 0.0
    %660 = vmatpush1.msra.mxu0 0.0
    %661 = vmatprep.subr.mxu0 0.0
    %662 = vmatpush1.msra.mxu0 0.0
    %663 = vmatprep.mubr.f32.mxu0 0.0
    %664 = vmatmul.mubr.f32.gmra.mrb[0].mxu0 %v594
    %v665 = vpop.f32.mrb[0].mxu0
    %v666 = vadd.f32 0.0, %v665
    %v667 = vpop.f32.mrb[0].mxu0
    %668 = vmatprep.mubr.f32.mxu0 0.0
    %669 = vmatmul.mubr.f32.gmra.mrb[0].mxu0 %v597
    %v670 = vpop.f32.mrb[0].mxu0
    %v671 = vadd.f32 0.0, %v670
    %v672 = vpop.f32.mrb[0].mxu0
    %673 = vdwg.mxu0
    %674 = vrot.lane.b32.xlu0 %v116, 112
    %v675 = vpop.permute.xlu0 %674
    %676 = vrot.lane.b32.xlu0 %v118, 112
    %v677 = vpop.permute.xlu0 %676
    %v681 = vsel %vm498, %v581, 0
    %v684 = vsel %vm498, %v582, 0
    %686 = vmatprep.subr.mxu0 0.0
    %687 = vmatpush1.msra.mxu0 %v675
    %688 = vmatprep.subr.mxu0 0.0
    %689 = vmatpush1.msra.mxu0 %v677
    %690 = vmatprep.subr.mxu0 0.0
    %691 = vmatpush1.msra.mxu0 0.0
    %692 = vmatprep.subr.mxu0 0.0
    %693 = vmatpush1.msra.mxu0 0.0
    %694 = vmatprep.subr.mxu0 0.0
    %695 = vmatpush1.msra.mxu0 0.0
    %696 = vmatprep.subr.mxu0 0.0
    %697 = vmatpush1.msra.mxu0 0.0
    %698 = vmatprep.subr.mxu0 0.0
    %699 = vmatpush1.msra.mxu0 0.0
    %700 = vmatprep.subr.mxu0 0.0
    %701 = vmatpush1.msra.mxu0 0.0
    %702 = vmatprep.subr.mxu0 0.0
    %703 = vmatpush1.msra.mxu0 0.0
    %704 = vmatprep.subr.mxu0 0.0
    %705 = vmatpush1.msra.mxu0 0.0
    %706 = vmatprep.subr.mxu0 0.0
    %707 = vmatpush1.msra.mxu0 0.0
    %708 = vmatprep.subr.mxu0 0.0
    %709 = vmatpush1.msra.mxu0 0.0
    %710 = vmatprep.subr.mxu0 0.0
    %711 = vmatpush1.msra.mxu0 0.0
    %712 = vmatprep.subr.mxu0 0.0
    %713 = vmatpush1.msra.mxu0 0.0
    %714 = vmatprep.subr.mxu0 0.0
    %715 = vmatpush1.msra.mxu0 0.0
    %716 = vmatprep.subr.mxu0 0.0
    %717 = vmatpush1.msra.mxu0 0.0
    %718 = vmatprep.subr.mxu0 0.0
    %719 = vmatpush1.msra.mxu0 0.0
    %720 = vmatprep.subr.mxu0 0.0
    %721 = vmatpush1.msra.mxu0 0.0
    %722 = vmatprep.subr.mxu0 0.0
    %723 = vmatpush1.msra.mxu0 0.0
    %724 = vmatprep.subr.mxu0 0.0
    %725 = vmatpush1.msra.mxu0 0.0
    %726 = vmatprep.subr.mxu0 0.0
    %727 = vmatpush1.msra.mxu0 0.0
    %728 = vmatprep.subr.mxu0 0.0
    %729 = vmatpush1.msra.mxu0 0.0
    %730 = vmatprep.subr.mxu0 0.0
    %731 = vmatpush1.msra.mxu0 0.0
    %732 = vmatprep.subr.mxu0 0.0
    %733 = vmatpush1.msra.mxu0 0.0
    %734 = vmatprep.subr.mxu0 0.0
    %735 = vmatpush1.msra.mxu0 0.0
    %736 = vmatprep.subr.mxu0 0.0
    %737 = vmatpush1.msra.mxu0 0.0
    %738 = vmatprep.subr.mxu0 0.0
    %739 = vmatpush1.msra.mxu0 0.0
    %740 = vmatprep.subr.mxu0 0.0
    %741 = vmatpush1.msra.mxu0 0.0
    %742 = vmatprep.subr.mxu0 0.0
    %743 = vmatpush1.msra.mxu0 0.0
    %744 = vmatprep.subr.mxu0 0.0
    %745 = vmatpush1.msra.mxu0 0.0
    %746 = vmatprep.subr.mxu0 0.0
    %747 = vmatpush1.msra.mxu0 0.0
    %748 = vmatprep.subr.mxu0 0.0
    %749 = vmatpush1.msra.mxu0 0.0
    %750 = vmatprep.mubr.f32.mxu0 0.0
    %751 = vmatmul.mubr.f32.gmra.mrb[0].mxu0 %v681
    %v752 = vpop.f32.mrb[0].mxu0
    %v753 = vadd.f32 0.0, %v752
    %v754 = vpop.f32.mrb[0].mxu0
    %755 = vmatprep.mubr.f32.mxu0 0.0
    %756 = vmatmul.mubr.f32.gmra.mrb[0].mxu0 %v684
    %v757 = vpop.f32.mrb[0].mxu0
    %v758 = vadd.f32 0.0, %v757
    %v759 = vpop.f32.mrb[0].mxu0
    %760 = vdwg.mxu0
    %761 = vrot.lane.b32.xlu0 %v122, 112
    %v762 = vpop.permute.xlu0 %761
    %763 = vrot.lane.b32.xlu0 %v124, 112
    %v764 = vpop.permute.xlu0 %763
    %v768 = vsel %vm498, %v583, 0
    %v771 = vsel %vm498, %v584, 0
    %773 = vmatprep.subr.mxu0 0.0
    %774 = vmatpush1.msra.mxu0 %v762
    %775 = vmatprep.subr.mxu0 0.0
    %776 = vmatpush1.msra.mxu0 %v764
    %777 = vmatprep.subr.mxu0 0.0
    %778 = vmatpush1.msra.mxu0 0.0
    %779 = vmatprep.subr.mxu0 0.0
    %780 = vmatpush1.msra.mxu0 0.0
    %781 = vmatprep.subr.mxu0 0.0
    %782 = vmatpush1.msra.mxu0 0.0
    %783 = vmatprep.subr.mxu0 0.0
    %784 = vmatpush1.msra.mxu0 0.0
    %785 = vmatprep.subr.mxu0 0.0
    %786 = vmatpush1.msra.mxu0 0.0
    %787 = vmatprep.subr.mxu0 0.0
    %788 = vmatpush1.msra.mxu0 0.0
    %789 = vmatprep.subr.mxu0 0.0
    %790 = vmatpush1.msra.mxu0 0.0
    %791 = vmatprep.subr.mxu0 0.0
    %792 = vmatpush1.msra.mxu0 0.0
    %793 = vmatprep.subr.mxu0 0.0
    %794 = vmatpush1.msra.mxu0 0.0
    %795 = vmatprep.subr.mxu0 0.0
    %796 = vmatpush1.msra.mxu0 0.0
    %797 = vmatprep.subr.mxu0 0.0
    %798 = vmatpush1.msra.mxu0 0.0
    %799 = vmatprep.subr.mxu0 0.0
    %800 = vmatpush1.msra.mxu0 0.0
    %801 = vmatprep.subr.mxu0 0.0
    %802 = vmatpush1.msra.mxu0 0.0
    %803 = vmatprep.subr.mxu0 0.0
    %804 = vmatpush1.msra.mxu0 0.0
    %805 = vmatprep.subr.mxu0 0.0
    %806 = vmatpush1.msra.mxu0 0.0
    %807 = vmatprep.subr.mxu0 0.0
    %808 = vmatpush1.msra.mxu0 0.0
    %809 = vmatprep.subr.mxu0 0.0
    %810 = vmatpush1.msra.mxu0 0.0
    %811 = vmatprep.subr.mxu0 0.0
    %812 = vmatpush1.msra.mxu0 0.0
    %813 = vmatprep.subr.mxu0 0.0
    %814 = vmatpush1.msra.mxu0 0.0
    %815 = vmatprep.subr.mxu0 0.0
    %816 = vmatpush1.msra.mxu0 0.0
    %817 = vmatprep.subr.mxu0 0.0
    %818 = vmatpush1.msra.mxu0 0.0
    %819 = vmatprep.subr.mxu0 0.0
    %820 = vmatpush1.msra.mxu0 0.0
    %821 = vmatprep.subr.mxu0 0.0
    %822 = vmatpush1.msra.mxu0 0.0
    %823 = vmatprep.subr.mxu0 0.0
    %824 = vmatpush1.msra.mxu0 0.0
    %825 = vmatprep.subr.mxu0 0.0
    %826 = vmatpush1.msra.mxu0 0.0
    %827 = vmatprep.subr.mxu0 0.0
    %828 = vmatpush1.msra.mxu0 0.0
    %829 = vmatprep.subr.mxu0 0.0
    %830 = vmatpush1.msra.mxu0 0.0
    %831 = vmatprep.subr.mxu0 0.0
    %832 = vmatpush1.msra.mxu0 0.0
    %833 = vmatprep.subr.mxu0 0.0
    %834 = vmatpush1.msra.mxu0 0.0
    %835 = vmatprep.subr.mxu0 0.0
    %836 = vmatpush1.msra.mxu0 0.0
    %837 = vmatprep.mubr.f32.mxu0 0.0
    %838 = vmatmul.mubr.f32.gmra.mrb[0].mxu0 %v768
    %v839 = vpop.f32.mrb[0].mxu0
    %v840 = vadd.f32 0.0, %v839
    %v841 = vpop.f32.mrb[0].mxu0
    %842 = vmatprep.mubr.f32.mxu0 0.0
    %843 = vmatmul.mubr.f32.gmra.mrb[0].mxu0 %v771
    %v844 = vpop.f32.mrb[0].mxu0
    %v845 = vadd.f32 0.0, %v844
    %v846 = vpop.f32.mrb[0].mxu0
    %847 = vdwg.mxu0
    %848 = vrot.lane.b32.xlu0 %v128, 112
    %v849 = vpop.permute.xlu0 %848
    %850 = vrot.lane.b32.xlu0 %v130, 112
    %v851 = vpop.permute.xlu0 %850
    %v855 = vsel %vm498, %v585, 0
    %v858 = vsel %vm498, %v586, 0
    %860 = vmatprep.subr.mxu0 0.0
    %861 = vmatpush1.msra.mxu0 %v849
    %862 = vmatprep.subr.mxu0 0.0
    %863 = vmatpush1.msra.mxu0 %v851
    %864 = vmatprep.subr.mxu0 0.0
    %865 = vmatpush1.msra.mxu0 0.0
    %866 = vmatprep.subr.mxu0 0.0
    %867 = vmatpush1.msra.mxu0 0.0
    %868 = vmatprep.subr.mxu0 0.0
    %869 = vmatpush1.msra.mxu0 0.0
    %870 = vmatprep.subr.mxu0 0.0
    %871 = vmatpush1.msra.mxu0 0.0
    %872 = vmatprep.subr.mxu0 0.0
    %873 = vmatpush1.msra.mxu0 0.0
    %874 = vmatprep.subr.mxu0 0.0
    %875 = vmatpush1.msra.mxu0 0.0
    %876 = vmatprep.subr.mxu0 0.0
    %877 = vmatpush1.msra.mxu0 0.0
    %878 = vmatprep.subr.mxu0 0.0
    %879 = vmatpush1.msra.mxu0 0.0
    %880 = vmatprep.subr.mxu0 0.0
    %881 = vmatpush1.msra.mxu0 0.0
    %882 = vmatprep.subr.mxu0 0.0
    %883 = vmatpush1.msra.mxu0 0.0
    %884 = vmatprep.subr.mxu0 0.0
    %885 = vmatpush1.msra.mxu0 0.0
    %886 = vmatprep.subr.mxu0 0.0
    %887 = vmatpush1.msra.mxu0 0.0
    %888 = vmatprep.subr.mxu0 0.0
    %889 = vmatpush1.msra.mxu0 0.0
    %890 = vmatprep.subr.mxu0 0.0
    %891 = vmatpush1.msra.mxu0 0.0
    %892 = vmatprep.subr.mxu0 0.0
    %893 = vmatpush1.msra.mxu0 0.0
    %894 = vmatprep.subr.mxu0 0.0
    %895 = vmatpush1.msra.mxu0 0.0
    %896 = vmatprep.subr.mxu0 0.0
    %897 = vmatpush1.msra.mxu0 0.0
    %898 = vmatprep.subr.mxu0 0.0
    %899 = vmatpush1.msra.mxu0 0.0
    %900 = vmatprep.subr.mxu0 0.0
    %901 = vmatpush1.msra.mxu0 0.0
    %902 = vmatprep.subr.mxu0 0.0
    %903 = vmatpush1.msra.mxu0 0.0
    %904 = vmatprep.subr.mxu0 0.0
    %905 = vmatpush1.msra.mxu0 0.0
    %906 = vmatprep.subr.mxu0 0.0
    %907 = vmatpush1.msra.mxu0 0.0
    %908 = vmatprep.subr.mxu0 0.0
    %909 = vmatpush1.msra.mxu0 0.0
    %910 = vmatprep.subr.mxu0 0.0
    %911 = vmatpush1.msra.mxu0 0.0
    %912 = vmatprep.subr.mxu0 0.0
    %913 = vmatpush1.msra.mxu0 0.0
    %914 = vmatprep.subr.mxu0 0.0
    %915 = vmatpush1.msra.mxu0 0.0
    %916 = vmatprep.subr.mxu0 0.0
    %917 = vmatpush1.msra.mxu0 0.0
    %918 = vmatprep.subr.mxu0 0.0
    %919 = vmatpush1.msra.mxu0 0.0
    %920 = vmatprep.subr.mxu0 0.0
    %921 = vmatpush1.msra.mxu0 0.0
    %922 = vmatprep.subr.mxu0 0.0
    %923 = vmatpush1.msra.mxu0 0.0
    %924 = vmatprep.mubr.f32.mxu0 0.0
    %925 = vmatmul.mubr.f32.gmra.mrb[0].mxu0 %v855
    %v926 = vpop.f32.mrb[0].mxu0
    %v927 = vadd.f32 0.0, %v926
    %v928 = vpop.f32.mrb[0].mxu0
    %929 = vmatprep.mubr.f32.mxu0 0.0
    %930 = vmatmul.mubr.f32.gmra.mrb[0].mxu0 %v858
    %v931 = vpop.f32.mrb[0].mxu0
    %v932 = vadd.f32 0.0, %v931
    %v933 = vpop.f32.mrb[0].mxu0
    %934 = vdwg.mxu0
    %936 = vrot.lane.b32.xlu0 %v22, 32
    %v937 = vpop.permute.xlu0 %936
    %v940 = vsel %vm145, %v666, 0
    %v943 = vsel %vm145, %v671, 0
    %945 = vmatprep.subr.mxu0 0.0
    %946 = vmatpush1.msra.mxu0 %v937
    %947 = vmatprep.subr.mxu0 0.0
    %948 = vmatpush1.msra.mxu0 0.0
    %949 = vmatprep.subr.mxu0 0.0
    %950 = vmatpush1.msra.mxu0 0.0
    %951 = vmatprep.subr.mxu0 0.0
    %952 = vmatpush1.msra.mxu0 0.0
    %953 = vmatprep.subr.mxu0 0.0
    %954 = vmatpush1.msra.mxu0 0.0
    %955 = vmatprep.subr.mxu0 0.0
    %956 = vmatpush1.msra.mxu0 0.0
    %957 = vmatprep.subr.mxu0 0.0
    %958 = vmatpush1.msra.mxu0 0.0
    %959 = vmatprep.subr.mxu0 0.0
    %960 = vmatpush1.msra.mxu0 0.0
    %961 = vmatprep.subr.mxu0 0.0
    %962 = vmatpush1.msra.mxu0 0.0
    %963 = vmatprep.subr.mxu0 0.0
    %964 = vmatpush1.msra.mxu0 0.0
    %965 = vmatprep.subr.mxu0 0.0
    %966 = vmatpush1.msra.mxu0 0.0
    %967 = vmatprep.subr.mxu0 0.0
    %968 = vmatpush1.msra.mxu0 0.0
    %969 = vmatprep.subr.mxu0 0.0
    %970 = vmatpush1.msra.mxu0 0.0
    %971 = vmatprep.subr.mxu0 0.0
    %972 = vmatpush1.msra.mxu0 0.0
    %973 = vmatprep.subr.mxu0 0.0
    %974 = vmatpush1.msra.mxu0 0.0
    %975 = vmatprep.subr.mxu0 0.0
    %976 = vmatpush1.msra.mxu0 0.0
    %977 = vmatprep.subr.mxu0 0.0
    %978 = vmatpush1.msra.mxu0 0.0
    %979 = vmatprep.subr.mxu0 0.0
    %980 = vmatpush1.msra.mxu0 0.0
    %981 = vmatprep.subr.mxu0 0.0
    %982 = vmatpush1.msra.mxu0 0.0
    %983 = vmatprep.subr.mxu0 0.0
    %984 = vmatpush1.msra.mxu0 0.0
    %985 = vmatprep.subr.mxu0 0.0
    %986 = vmatpush1.msra.mxu0 0.0
    %987 = vmatprep.subr.mxu0 0.0
    %988 = vmatpush1.msra.mxu0 0.0
    %989 = vmatprep.subr.mxu0 0.0
    %990 = vmatpush1.msra.mxu0 0.0
    %991 = vmatprep.subr.mxu0 0.0
    %992 = vmatpush1.msra.mxu0 0.0
    %993 = vmatprep.subr.mxu0 0.0
    %994 = vmatpush1.msra.mxu0 0.0
    %995 = vmatprep.subr.mxu0 0.0
    %996 = vmatpush1.msra.mxu0 0.0
    %997 = vmatprep.subr.mxu0 0.0
    %998 = vmatpush1.msra.mxu0 0.0
    %999 = vmatprep.subr.mxu0 0.0
    %1000 = vmatpush1.msra.mxu0 0.0
    %1001 = vmatprep.subr.mxu0 0.0
    %1002 = vmatpush1.msra.mxu0 0.0
    %1003 = vmatprep.subr.mxu0 0.0
    %1004 = vmatpush1.msra.mxu0 0.0
    %1005 = vmatprep.subr.mxu0 0.0
    %1006 = vmatpush1.msra.mxu0 0.0
    %1007 = vmatprep.subr.mxu0 0.0
    %1008 = vmatpush1.msra.mxu0 0.0
    %1009 = vmatprep.mubr.f32.mxu0 0.0
    %1010 = vmatmul.mubr.f32.gmra.mrb[0].mxu0 %v940
    %v1011 = vpop.f32.mrb[0].mxu0
    %v1012 = vadd.f32 0.0, %v1011
    %v1013 = vpop.f32.mrb[0].mxu0
    %1014 = vmatprep.mubr.f32.mxu0 0.0
    %1015 = vmatmul.mubr.f32.gmra.mrb[0].mxu0 %v943
    %v1016 = vpop.f32.mrb[0].mxu0
    %v1017 = vadd.f32 0.0, %v1016
    %v1018 = vpop.f32.mrb[0].mxu0
    %1019 = vdwg.mxu0
    %1022 = vrot.lane.b32.xlu0 %v1012, 96
    %v1023 = vpop.permute.xlu0 %1022
    %1024 = vrot.lane.b32.xlu0 %v1017, 96
    %v1025 = vpop.permute.xlu0 %1024
    %v1028 = vadd.f32 %v30, %v1023
    %v1029 = vadd.f32 %v30, %v1025
    %1031 = vrot.lane.b32.xlu0 %v23, 32
    %v1032 = vpop.permute.xlu0 %1031
    %v1035 = vsel %vm145, %v753, 0
    %v1038 = vsel %vm145, %v758, 0
    %1040 = vmatprep.subr.mxu0 0.0
    %1041 = vmatpush1.msra.mxu0 %v1032
    %1042 = vmatprep.subr.mxu0 0.0
    %1043 = vmatpush1.msra.mxu0 0.0
    %1044 = vmatprep.subr.mxu0 0.0
    %1045 = vmatpush1.msra.mxu0 0.0
    %1046 = vmatprep.subr.mxu0 0.0
    %1047 = vmatpush1.msra.mxu0 0.0
    %1048 = vmatprep.subr.mxu0 0.0
    %1049 = vmatpush1.msra.mxu0 0.0
    %1050 = vmatprep.subr.mxu0 0.0
    %1051 = vmatpush1.msra.mxu0 0.0
    %1052 = vmatprep.subr.mxu0 0.0
    %1053 = vmatpush1.msra.mxu0 0.0
    %1054 = vmatprep.subr.mxu0 0.0
    %1055 = vmatpush1.msra.mxu0 0.0
    %1056 = vmatprep.subr.mxu0 0.0
    %1057 = vmatpush1.msra.mxu0 0.0
    %1058 = vmatprep.subr.mxu0 0.0
    %1059 = vmatpush1.msra.mxu0 0.0
    %1060 = vmatprep.subr.mxu0 0.0
    %1061 = vmatpush1.msra.mxu0 0.0
    %1062 = vmatprep.subr.mxu0 0.0
    %1063 = vmatpush1.msra.mxu0 0.0
    %1064 = vmatprep.subr.mxu0 0.0
    %1065 = vmatpush1.msra.mxu0 0.0
    %1066 = vmatprep.subr.mxu0 0.0
    %1067 = vmatpush1.msra.mxu0 0.0
    %1068 = vmatprep.subr.mxu0 0.0
    %1069 = vmatpush1.msra.mxu0 0.0
    %1070 = vmatprep.subr.mxu0 0.0
    %1071 = vmatpush1.msra.mxu0 0.0
    %1072 = vmatprep.subr.mxu0 0.0
    %1073 = vmatpush1.msra.mxu0 0.0
    %1074 = vmatprep.subr.mxu0 0.0
    %1075 = vmatpush1.msra.mxu0 0.0
    %1076 = vmatprep.subr.mxu0 0.0
    %1077 = vmatpush1.msra.mxu0 0.0
    %1078 = vmatprep.subr.mxu0 0.0
    %1079 = vmatpush1.msra.mxu0 0.0
    %1080 = vmatprep.subr.mxu0 0.0
    %1081 = vmatpush1.msra.mxu0 0.0
    %1082 = vmatprep.subr.mxu0 0.0
    %1083 = vmatpush1.msra.mxu0 0.0
    %1084 = vmatprep.subr.mxu0 0.0
    %1085 = vmatpush1.msra.mxu0 0.0
    %1086 = vmatprep.subr.mxu0 0.0
    %1087 = vmatpush1.msra.mxu0 0.0
    %1088 = vmatprep.subr.mxu0 0.0
    %1089 = vmatpush1.msra.mxu0 0.0
    %1090 = vmatprep.subr.mxu0 0.0
    %1091 = vmatpush1.msra.mxu0 0.0
    %1092 = vmatprep.subr.mxu0 0.0
    %1093 = vmatpush1.msra.mxu0 0.0
    %1094 = vmatprep.subr.mxu0 0.0
    %1095 = vmatpush1.msra.mxu0 0.0
    %1096 = vmatprep.subr.mxu0 0.0
    %1097 = vmatpush1.msra.mxu0 0.0
    %1098 = vmatprep.subr.mxu0 0.0
    %1099 = vmatpush1.msra.mxu0 0.0
    %1100 = vmatprep.subr.mxu0 0.0
    %1101 = vmatpush1.msra.mxu0 0.0
    %1102 = vmatprep.subr.mxu0 0.0
    %1103 = vmatpush1.msra.mxu0 0.0
    %1104 = vmatprep.mubr.f32.mxu0 0.0
    %1105 = vmatmul.mubr.f32.gmra.mrb[0].mxu0 %v1035
    %v1106 = vpop.f32.mrb[0].mxu0
    %v1107 = vadd.f32 0.0, %v1106
    %v1108 = vpop.f32.mrb[0].mxu0
    %1109 = vmatprep.mubr.f32.mxu0 0.0
    %1110 = vmatmul.mubr.f32.gmra.mrb[0].mxu0 %v1038
    %v1111 = vpop.f32.mrb[0].mxu0
    %v1112 = vadd.f32 0.0, %v1111
    %v1113 = vpop.f32.mrb[0].mxu0
    %1114 = vdwg.mxu0
    %1117 = vrot.lane.b32.xlu0 %v1107, 96
    %v1118 = vpop.permute.xlu0 %1117
    %1119 = vrot.lane.b32.xlu0 %v1112, 96
    %v1120 = vpop.permute.xlu0 %1119
    %v1123 = vadd.f32 %v1028, %v1118
    %v1124 = vadd.f32 %v1029, %v1120
    %1126 = vrot.lane.b32.xlu0 %v24, 32
    %v1127 = vpop.permute.xlu0 %1126
    %v1130 = vsel %vm145, %v840, 0
    %v1133 = vsel %vm145, %v845, 0
    %1135 = vmatprep.subr.mxu0 0.0
    %1136 = vmatpush1.msra.mxu0 %v1127
    %1137 = vmatprep.subr.mxu0 0.0
    %1138 = vmatpush1.msra.mxu0 0.0
    %1139 = vmatprep.subr.mxu0 0.0
    %1140 = vmatpush1.msra.mxu0 0.0
    %1141 = vmatprep.subr.mxu0 0.0
    %1142 = vmatpush1.msra.mxu0 0.0
    %1143 = vmatprep.subr.mxu0 0.0
    %1144 = vmatpush1.msra.mxu0 0.0
    %1145 = vmatprep.subr.mxu0 0.0
    %1146 = vmatpush1.msra.mxu0 0.0
    %1147 = vmatprep.subr.mxu0 0.0
    %1148 = vmatpush1.msra.mxu0 0.0
    %1149 = vmatprep.subr.mxu0 0.0
    %1150 = vmatpush1.msra.mxu0 0.0
    %1151 = vmatprep.subr.mxu0 0.0
    %1152 = vmatpush1.msra.mxu0 0.0
    %1153 = vmatprep.subr.mxu0 0.0
    %1154 = vmatpush1.msra.mxu0 0.0
    %1155 = vmatprep.subr.mxu0 0.0
    %1156 = vmatpush1.msra.mxu0 0.0
    %1157 = vmatprep.subr.mxu0 0.0
    %1158 = vmatpush1.msra.mxu0 0.0
    %1159 = vmatprep.subr.mxu0 0.0
    %1160 = vmatpush1.msra.mxu0 0.0
    %1161 = vmatprep.subr.mxu0 0.0
    %1162 = vmatpush1.msra.mxu0 0.0
    %1163 = vmatprep.subr.mxu0 0.0
    %1164 = vmatpush1.msra.mxu0 0.0
    %1165 = vmatprep.subr.mxu0 0.0
    %1166 = vmatpush1.msra.mxu0 0.0
    %1167 = vmatprep.subr.mxu0 0.0
    %1168 = vmatpush1.msra.mxu0 0.0
    %1169 = vmatprep.subr.mxu0 0.0
    %1170 = vmatpush1.msra.mxu0 0.0
    %1171 = vmatprep.subr.mxu0 0.0
    %1172 = vmatpush1.msra.mxu0 0.0
    %1173 = vmatprep.subr.mxu0 0.0
    %1174 = vmatpush1.msra.mxu0 0.0
    %1175 = vmatprep.subr.mxu0 0.0
    %1176 = vmatpush1.msra.mxu0 0.0
    %1177 = vmatprep.subr.mxu0 0.0
    %1178 = vmatpush1.msra.mxu0 0.0
    %1179 = vmatprep.subr.mxu0 0.0
    %1180 = vmatpush1.msra.mxu0 0.0
    %1181 = vmatprep.subr.mxu0 0.0
    %1182 = vmatpush1.msra.mxu0 0.0
    %1183 = vmatprep.subr.mxu0 0.0
    %1184 = vmatpush1.msra.mxu0 0.0
    %1185 = vmatprep.subr.mxu0 0.0
    %1186 = vmatpush1.msra.mxu0 0.0
    %1187 = vmatprep.subr.mxu0 0.0
    %1188 = vmatpush1.msra.mxu0 0.0
    %1189 = vmatprep.subr.mxu0 0.0
    %1190 = vmatpush1.msra.mxu0 0.0
    %1191 = vmatprep.subr.mxu0 0.0
    %1192 = vmatpush1.msra.mxu0 0.0
    %1193 = vmatprep.subr.mxu0 0.0
    %1194 = vmatpush1.msra.mxu0 0.0
    %1195 = vmatprep.subr.mxu0 0.0
    %1196 = vmatpush1.msra.mxu0 0.0
    %1197 = vmatprep.subr.mxu0 0.0
    %1198 = vmatpush1.msra.mxu0 0.0
    %1199 = vmatprep.mubr.f32.mxu0 0.0
    %1200 = vmatmul.mubr.f32.gmra.mrb[0].mxu0 %v1130
    %v1201 = vpop.f32.mrb[0].mxu0
    %v1202 = vadd.f32 0.0, %v1201
    %v1203 = vpop.f32.mrb[0].mxu0
    %1204 = vmatprep.mubr.f32.mxu0 0.0
    %1205 = vmatmul.mubr.f32.gmra.mrb[0].mxu0 %v1133
    %v1206 = vpop.f32.mrb[0].mxu0
    %v1207 = vadd.f32 0.0, %v1206
    %v1208 = vpop.f32.mrb[0].mxu0
    %1209 = vdwg.mxu0
    %1212 = vrot.lane.b32.xlu0 %v1202, 96
    %v1213 = vpop.permute.xlu0 %1212
    %1214 = vrot.lane.b32.xlu0 %v1207, 96
    %v1215 = vpop.permute.xlu0 %1214
    %v1218 = vadd.f32 %v1123, %v1213
    %v1219 = vadd.f32 %v1124, %v1215
    %1221 = vrot.lane.b32.xlu0 %v25, 32
    %v1222 = vpop.permute.xlu0 %1221
    %v1225 = vsel %vm145, %v927, 0
    %v1228 = vsel %vm145, %v932, 0
    %1230 = vmatprep.subr.mxu0 0.0
    %1231 = vmatpush1.msra.mxu0 %v1222
    %1232 = vmatprep.subr.mxu0 0.0
    %1233 = vmatpush1.msra.mxu0 0.0
    %1234 = vmatprep.subr.mxu0 0.0
    %1235 = vmatpush1.msra.mxu0 0.0
    %1236 = vmatprep.subr.mxu0 0.0
    %1237 = vmatpush1.msra.mxu0 0.0
    %1238 = vmatprep.subr.mxu0 0.0
    %1239 = vmatpush1.msra.mxu0 0.0
    %1240 = vmatprep.subr.mxu0 0.0
    %1241 = vmatpush1.msra.mxu0 0.0
    %1242 = vmatprep.subr.mxu0 0.0
    %1243 = vmatpush1.msra.mxu0 0.0
    %1244 = vmatprep.subr.mxu0 0.0
    %1245 = vmatpush1.msra.mxu0 0.0
    %1246 = vmatprep.subr.mxu0 0.0
    %1247 = vmatpush1.msra.mxu0 0.0
    %1248 = vmatprep.subr.mxu0 0.0
    %1249 = vmatpush1.msra.mxu0 0.0
    %1250 = vmatprep.subr.mxu0 0.0
    %1251 = vmatpush1.msra.mxu0 0.0
    %1252 = vmatprep.subr.mxu0 0.0
    %1253 = vmatpush1.msra.mxu0 0.0
    %1254 = vmatprep.subr.mxu0 0.0
    %1255 = vmatpush1.msra.mxu0 0.0
    %1256 = vmatprep.subr.mxu0 0.0
    %1257 = vmatpush1.msra.mxu0 0.0
    %1258 = vmatprep.subr.mxu0 0.0
    %1259 = vmatpush1.msra.mxu0 0.0
    %1260 = vmatprep.subr.mxu0 0.0
    %1261 = vmatpush1.msra.mxu0 0.0
    %1262 = vmatprep.subr.mxu0 0.0
    %1263 = vmatpush1.msra.mxu0 0.0
    %1264 = vmatprep.subr.mxu0 0.0
    %1265 = vmatpush1.msra.mxu0 0.0
    %1266 = vmatprep.subr.mxu0 0.0
    %1267 = vmatpush1.msra.mxu0 0.0
    %1268 = vmatprep.subr.mxu0 0.0
    %1269 = vmatpush1.msra.mxu0 0.0
    %1270 = vmatprep.subr.mxu0 0.0
    %1271 = vmatpush1.msra.mxu0 0.0
    %1272 = vmatprep.subr.mxu0 0.0
    %1273 = vmatpush1.msra.mxu0 0.0
    %1274 = vmatprep.subr.mxu0 0.0
    %1275 = vmatpush1.msra.mxu0 0.0
    %1276 = vmatprep.subr.mxu0 0.0
    %1277 = vmatpush1.msra.mxu0 0.0
    %1278 = vmatprep.subr.mxu0 0.0
    %1279 = vmatpush1.msra.mxu0 0.0
    %1280 = vmatprep.subr.mxu0 0.0
    %1281 = vmatpush1.msra.mxu0 0.0
    %1282 = vmatprep.subr.mxu0 0.0
    %1283 = vmatpush1.msra.mxu0 0.0
    %1284 = vmatprep.subr.mxu0 0.0
    %1285 = vmatpush1.msra.mxu0 0.0
    %1286 = vmatprep.subr.mxu0 0.0
    %1287 = vmatpush1.msra.mxu0 0.0
    %1288 = vmatprep.subr.mxu0 0.0
    %1289 = vmatpush1.msra.mxu0 0.0
    %1290 = vmatprep.subr.mxu0 0.0
    %1291 = vmatpush1.msra.mxu0 0.0
    %1292 = vmatprep.subr.mxu0 0.0
    %1293 = vmatpush1.msra.mxu0 0.0
    %1294 = vmatprep.mubr.f32.mxu0 0.0
    %1295 = vmatmul.mubr.f32.gmra.mrb[0].mxu0 %v1225
    %v1296 = vpop.f32.mrb[0].mxu0
    %v1297 = vadd.f32 0.0, %v1296
    %v1298 = vpop.f32.mrb[0].mxu0
    %1299 = vmatprep.mubr.f32.mxu0 0.0
    %1300 = vmatmul.mubr.f32.gmra.mrb[0].mxu0 %v1228
    %v1301 = vpop.f32.mrb[0].mxu0
    %v1302 = vadd.f32 0.0, %v1301
    %v1303 = vpop.f32.mrb[0].mxu0
    %1304 = vdwg.mxu0
    %1307 = vrot.lane.b32.xlu0 %v1297, 96
    %v1308 = vpop.permute.xlu0 %1307
    %1309 = vrot.lane.b32.xlu0 %v1302, 96
    %v1310 = vpop.permute.xlu0 %1309
    %v1313 = vadd.f32 %v1218, %v1308
    %v1314 = vadd.f32 %v1219, %v1310
    %1315 = vrot.lane.b32.xlu0 %v18, 96
    %v1316 = vpop.permute.xlu0 %1315
    %1317 = vrot.lane.b32.xlu0 %v19, 96
    %v1318 = vpop.permute.xlu0 %1317
    %v1321 = vadd.f32 %v1313, %v1316
    %v1322 = vadd.f32 %v1314, %v1318
    %1325 = vrot.lane.b32.xlu0 %v1321, 32
    %v1326 = vpop.permute.xlu0 %1325
    %1327 = vrot.lane.b32.xlu0 %v1322, 32
    %v1328 = vpop.permute.xlu0 %1327
    %v1331 = vsel %vm31, %v1326, 0.0
    %1332 = vadd.xlane.f32.xlu0 %v1331
    %v1333 = vpop.xlane.xlu0 %1332
    %v1334 = vsel %vm31, %v1328, 0.0
    %1335 = vadd.xlane.f32.xlu0 %v1334
    %v1336 = vpop.xlane.xlu0 %1335
    %v1337 = vrcp.pop 32.0
    %v1338 = vmul.f32 %v1333, %v1337
    %v1339 = vmul.f32 %v1336, %v1337
    %v1340 = vsub.f32 %v1321, %v1338
    %v1341 = vsub.f32 %v1322, %v1339
    %v1342 = vmul.f32 %v1340, %v1340
    %v1343 = vmul.f32 %v1341, %v1341
    %1346 = vrot.lane.b32.xlu0 %v1342, 32
    %v1347 = vpop.permute.xlu0 %1346
    %1348 = vrot.lane.b32.xlu0 %v1343, 32
    %v1349 = vpop.permute.xlu0 %1348
    %v1352 = vsel %vm31, %v1347, 0.0
    %1353 = vadd.xlane.f32.xlu0 %v1352
    %v1354 = vpop.xlane.xlu0 %1353
    %v1355 = vsel %vm31, %v1349, 0.0
    %1356 = vadd.xlane.f32.xlu0 %v1355
    %v1357 = vpop.xlane.xlu0 %1356
    %v1358 = vmul.f32 %v1354, %v1337
    %v1359 = vmul.f32 %v1357, %v1337
    %v1360 = vadd.f32 %v1358, 1e-12
    %v1361 = vadd.f32 %v1359, 1e-12
    %v1362 = vrsqrt.pop %v1360
    %v1363 = vrsqrt.pop %v1361
    %v1364 = vmul.f32 %v1340, %v1362
    %v1365 = vmul.f32 %v1341, %v1363
    %v1366 = vlaneseq
    %v1367 = vshrl.u32 %v1366, 7
    %v1368 = vsub.s32 1, %v1367
    %v1369 = vrot.slane %v26, %v1368
    %1371 = vrot.lane.b32.xlu0 %v1369, 96
    %v1372 = vpop.permute.xlu0 %1371
    %v1374 = vmul.f32 %v1364, %v1372
    %v1375 = vmul.f32 %v1365, %v1372
    %1376 = vrot.lane.b32.xlu0 %v1369, 64
    %v1377 = vpop.permute.xlu0 %1376
    %v1379 = vadd.f32 %v1374, %v1377
    %v1380 = vadd.f32 %v1375, %v1377
    %1383 = vrot.lane.b32.xlu0 %v1379, 32
    %v1384 = vpop.permute.xlu0 %1383
    %1385 = vrot.lane.b32.xlu0 %v1380, 32
    %v1386 = vpop.permute.xlu0 %1385
    %1389 = vst.msk [vmem:[#allocation2] sm:$0xff] %vm31, %v1384
    %1390 = vst.msk [vmem:[#allocation2 + $0x8] sm:$0xff] %vm31, %v1386
    // Predicated region
    $region18: #{multi_head_attention.1} parent=1 // pred_check
      _
    $region19: #{multi_head_attention.1} parent=1 // pred_check_branch
      %1392 = sbr.rel (0) target = $region21
    $region20: #{multi_head_attention.1} parent=1 // pred_region
      %s1394 = ssub.s32 256, 256
      %1395 = vsyncadd [#allocation3], %s1394
      %s1396 = sshll.u32 [#allocation2], 4
      %s1397 = int_to_ptr.vmem [resolvable:$true] %s1396
      %1402 = dma.vmem_to_hbm [thread:$0]  %s1397, 256, %s4, [#allocation3], 128, 128, 8
    $region21: #{multi_head_attention.1} parent=1 // pred_fallthru
      _
    // Predicated region
    $region22: #{multi_head_attention.1} parent=1 // pred_check
      _
    $region23: #{multi_head_attention.1} parent=1 // pred_check_branch
      %1404 = sbr.rel (0) target = $region25
    $region24: #{multi_head_attention.1} parent=1 // pred_region
      %1405 = dma.done [#allocation3], 256
    $region25: #{multi_head_attention.1} parent=1 // pred_fallthru
      _
    %1406 = vsyncpa [#allocation3], 1

</llo_original>
